<compile_context>
chip_gen: v7x
topology: tpu7x:2x2x1
jax: 0.10.0
libtpu: 0.0.40
codegen_flags: <defaults>
</compile_context>

<pallas_src>
import functools

import jax
import jax.numpy as jnp
from jax.experimental import pallas as pl
from jax.experimental.pallas import tpu as pltpu


def projection_kernel(x_ref, w1_ref, gb_ref, w2_ref, b2_ref, o_ref, acc_ref,
                      *, inv_batch):
    j = pl.program_id(0)

    @pl.when(j == 0)
    def _init():
        # Fold bias2 into the accumulator init (replaces the zeros fill and
        # removes the epilogue add over (B, out_dim)).
        acc_ref[...] = jnp.broadcast_to(b2_ref[...], acc_ref.shape)

    # ---- Linear 1, one hidden-column tile: bf16 operands on MXU, f32 acc.
    # b1 intentionally omitted: cancelled exactly by the BN mean subtraction.
    h = jnp.dot(x_ref[...], w1_ref[...], preferred_element_type=jnp.float32)

    # ---- BatchNorm1d (training forward: biased batch stats), one-pass var,
    # affine folded into a single scale/shift pass. inv_batch uses the TRUE
    # batch size; padded rows of x are exact zeros and add nothing to the sums.
    mean = jnp.sum(h, axis=0, keepdims=True) * inv_batch
    mean_sq = jnp.sum(h * h, axis=0, keepdims=True) * inv_batch
    var = jnp.maximum(mean_sq - mean * mean, 0.0)   # clamp cancellation noise
    gb = gb_ref[...]
    gamma = gb[0:1, :]
    beta = gb[1:2, :]
    scale = gamma * jax.lax.rsqrt(var + 1e-5)
    shift = beta - mean * scale
    h = jnp.maximum(h * scale + shift, 0.0)          # BN affine + ReLU fused

    # ---- Linear 2 partial contribution for this hidden tile (bf16 MXU).
    acc_ref[...] += jnp.dot(h.astype(w2_ref.dtype), w2_ref[...],
                            preferred_element_type=jnp.float32)

    # ---- Finalize: L2 normalize (rsqrt-multiply; bias2 already folded in).
    @pl.when(j == pl.num_programs(0) - 1)
    def _finalize():
        z = acc_ref[...]
        sumsq = jnp.sum(z * z, axis=1, keepdims=True)
        # F.normalize eps=1e-12 on ||z||_2  <=>  clamp sum-of-squares at 1e-24.
        inv_norm = jax.lax.rsqrt(jnp.maximum(sumsq, 1e-24))
        o_ref[...] = (z * inv_norm).astype(o_ref.dtype)


def projection_forward(x, w1, gamma, beta, w2, b2, *, tile_h=256,
                       weight_buffers=3, out_dtype=jnp.float32):
    """x: (B, in_dim); w1: (in_dim, hidden); w2: (hidden, out_dim) pre-transposed."""
    B_real, in_dim = x.shape
    hidden = w1.shape[1]
    out_dim = w2.shape[1]

    # BN batch statistics are always over the TRUE batch size.
    inv_batch = 1.0 / float(B_real)

    # Pad the batch to a multiple of 16 (bf16 sublane packing). Padded rows
    # are exact zeros (no b1 added), so BN sums are unchanged; padded output
    # rows are sliced off at the end.
    B = ((B_real + 15) // 16) * 16
    if B != B_real:
        x = jnp.pad(x, ((0, B - B_real), (0, 0)))

    # Hidden tile: default 256 to match the 256-wide MXU on v6e/v7x; fall back
    # to a divisor of hidden if needed.
    tile_h = min(tile_h, hidden)
    while hidden % tile_h:
        tile_h //= 2
    n_tiles = hidden // tile_h

    # bf16 MXU operands (f32 accumulation in-kernel); BN/normalize params f32.
    xb = x.astype(jnp.bfloat16)
    w1b = w1.astype(jnp.bfloat16)
    w2b = w2.astype(jnp.bfloat16)
    gb = jnp.concatenate(
        [gamma.reshape(1, hidden), beta.reshape(1, hidden)], axis=0
    ).astype(jnp.float32)                      # merged gamma/beta: one DMA/step
    b2f = b2.reshape(1, out_dim).astype(jnp.float32)

    # Streamed-weight buffering depth (clamped to the grid length).
    w_bufs = max(1, min(weight_buffers, n_tiles))

    # Explicit VMEM budget: resident single-buffered x + multi-buffered weight
    # tiles + output block + f32 accumulator + headroom, capped by the chip's
    # actual VMEM (v7x: 64 MiB).
    BF16, F32 = 2, 4
    vmem_bytes = (
        B * in_dim * BF16                      # x (single-buffered, resident)
        + w_bufs * in_dim * tile_h * BF16      # W1 column tiles
        + w_bufs * tile_h * out_dim * BF16     # W2 row tiles
        + 2 * 8 * tile_h * F32                 # gamma/beta tile (sublane pad)
        + 8 * out_dim * F32                    # b2
        + B * out_dim * F32                    # output block
        + B * out_dim * F32                    # accumulator scratch
        + (4 << 20))                           # headroom
    try:
        vmem_cap = int(pltpu.get_tpu_info().vmem_capacity_bytes)
    except Exception:
        vmem_cap = 64 << 20                    # conservative (v7x per-TC)
    vmem_limit = int(min(max(vmem_bytes, 8 << 20), vmem_cap - (4 << 20)))

    cost = pl.CostEstimate(
        flops=2 * B * (in_dim * hidden + hidden * out_dim),
        transcendentals=hidden + B,            # BN rsqrt + L2 rsqrt
        bytes_accessed=(B * in_dim * BF16 + in_dim * hidden * BF16
                        + hidden * out_dim * BF16 + 2 * hidden * F32
                        + out_dim * F32 + B * out_dim * F32),
    )

    def _build(use_pipeline_hints):
        def spec(shape, index_map, bufs=None):
            if use_pipeline_hints and bufs is not None:
                return pl.BlockSpec(shape, index_map,
                                    pipeline_mode=pl.Buffered(bufs))
            return pl.BlockSpec(shape, index_map)

        grid_spec = pltpu.PrefetchScalarGridSpec(
            num_scalar_prefetch=0,
            grid=(n_tiles,),
            in_specs=[
                # x: grid-invariant & largest operand -> resident, 1 buffer.
                spec((B, in_dim), lambda j: (0, 0), bufs=1),
                # Streamed weights: deeper buffering hides HBM DMA when the
                # kernel is weight-stream bound (small B).
                spec((in_dim, tile_h), lambda j: (0, j), bufs=w_bufs),
                spec((2, tile_h), lambda j: (0, j)),          # gamma+beta
                spec((tile_h, out_dim), lambda j: (j, 0), bufs=w_bufs),
                spec((1, out_dim), lambda j: (0, 0), bufs=1),  # b2
            ],
            out_specs=spec((B, out_dim), lambda j: (0, 0), bufs=1),
            scratch_shapes=[pltpu.VMEM((B, out_dim), jnp.float32)],
        )
        return pl.pallas_call(
            functools.partial(projection_kernel, inv_batch=inv_batch),
            out_shape=jax.ShapeDtypeStruct((B, out_dim), out_dtype),
            grid_spec=grid_spec,
            compiler_params=pltpu.CompilerParams(
                dimension_semantics=("arbitrary",),  # reduction / accumulator
                vmem_limit_bytes=vmem_limit,
            ),
            cost_estimate=cost,
        )

    try:
        out = _build(True)(xb, w1b, gb, w2b, b2f)
    except Exception:
        # Fallback if this JAX build rejects pipeline_mode / Buffered hints.
        out = _build(False)(xb, w1b, gb, w2b, b2f)
    return out[:B_real]


def init_params(key, input_dim, hidden_dim, output_dim):
    k1, k2, k3, k4 = jax.random.split(key, 4)
    bound1 = 1.0 / (input_dim ** 0.5)
    bound2 = 1.0 / (hidden_dim ** 0.5)
    # Linear weights stored pre-transposed: (in_features, out_features).
    w1 = jax.random.uniform(k1, (input_dim, hidden_dim), jnp.float32,
                            -bound1, bound1)
    b1 = jax.random.uniform(k2, (1, hidden_dim), jnp.float32, -bound1, bound1)
    gamma = jnp.ones((1, hidden_dim), jnp.float32)
    beta = jnp.zeros((1, hidden_dim), jnp.float32)
    w2 = jax.random.uniform(k3, (hidden_dim, output_dim), jnp.float32,
                            -bound2, bound2)
    b2 = jax.random.uniform(k4, (1, output_dim), jnp.float32, -bound2, bound2)
    return w1, b1, gamma, beta, w2, b2


def reference_forward_f32(x, w1, b1, gamma, beta, w2, b2):
    """Pure-JAX f32 reference of the PyTorch module's forward (b1 included)."""
    h = x @ w1 + b1
    mean = jnp.mean(h, axis=0, keepdims=True)
    var = jnp.mean((h - mean) ** 2, axis=0, keepdims=True)
    h = (h - mean) / jnp.sqrt(var + 1e-5) * gamma + beta
    h = jnp.maximum(h, 0.0)
    z = h @ w2 + b2
    norm = jnp.sqrt(jnp.sum(z * z, axis=1, keepdims=True))
    return z / jnp.maximum(norm, 1e-12)


def reference_forward_matched(x, w1, b1, gamma, beta, w2, b2):
    """Same math with the kernel's precision regime mirrored: bf16 matmul
    operands / f32 accumulation, folded-affine BN, one-pass variance, rsqrt."""
    h = jnp.dot(x.astype(jnp.bfloat16), w1.astype(jnp.bfloat16),
                preferred_element_type=jnp.float32) + b1
    mean = jnp.mean(h, axis=0, keepdims=True)
    var = jnp.maximum(jnp.mean(h * h, axis=0, keepdims=True) - mean * mean, 0.0)
    scale = gamma * jax.lax.rsqrt(var + 1e-5)
    shift = beta - mean * scale
    h = jnp.maximum(h * scale + shift, 0.0)
    z = jnp.dot(h.astype(jnp.bfloat16), w2.astype(jnp.bfloat16),
                preferred_element_type=jnp.float32) + b2
    inv_norm = jax.lax.rsqrt(jnp.maximum(jnp.sum(z * z, axis=1, keepdims=True),
                                         1e-24))
    return z * inv_norm


if __name__ == "__main__":
    # Small shapes consistent with the module (scaled-down dims); hidden=512
    # with tile_h=256 exercises the multi-step accumulation path.
    B, INPUT_DIM, HIDDEN_DIM, OUTPUT_DIM = 8, 256, 512, 128

    key = jax.random.PRNGKey(0)
    kx, kp = jax.random.split(key)
    x = jax.random.normal(kx, (B, INPUT_DIM), jnp.float32)
    w1, b1, gamma, beta, w2, b2 = init_params(kp, INPUT_DIM, HIDDEN_DIM,
                                              OUTPUT_DIM)

    # b1 intentionally not passed: training-mode BN cancels it exactly.
    out = projection_forward(x, w1, gamma, beta, w2, b2)
    out = jax.block_until_ready(out)
    assert out.shape == (B, OUTPUT_DIM)

    # Tight check vs a reference mirroring the kernel's MXU/BN precision regime.
    ref_matched = reference_forward_matched(x, w1, b1, gamma, beta, w2, b2)
    assert jnp.allclose(out, ref_matched, atol=3e-4, rtol=1e-4), float(
        jnp.max(jnp.abs(out - ref_matched)))

    # Sanity check vs the pure-f32 module semantics (bf16-rounding tolerance).
    ref_f32 = reference_forward_f32(x, w1, b1, gamma, beta, w2, b2)
    assert jnp.allclose(out, ref_f32, atol=2e-2, rtol=2e-2), float(
        jnp.max(jnp.abs(out - ref_f32)))

    print("KERNEL_OK")
</pallas_src>

<mosaic_0001>
module attributes {stable_mosaic.version = 11 : i64} {
  func.func @projection_kernel(%arg0: i32, %arg1: memref<16x256xbf16, #tpu.memory_space<vmem>>, %arg2: memref<256x256xbf16, #tpu.memory_space<vmem>>, %arg3: memref<2x256xf32, #tpu.memory_space<vmem>>, %arg4: memref<256x128xbf16, #tpu.memory_space<vmem>>, %arg5: memref<1x128xf32, #tpu.memory_space<vmem>>, %arg6: memref<16x128xf32, #tpu.memory_space<vmem>>, %arg7: memref<16x128xf32, #tpu.memory_space<vmem>>) attributes {dimension_semantics = [#tpu.dimension_semantics<arbitrary>], iteration_bounds = array<i64: 2>, scalar_prefetch = 0 : i64, scratch_operands = 1 : i64, tpu.core_type = #tpu.core_type<tc>, window_params = [{pipeline_mode = #tpu.pipeline_mode<synchronous>, transform_indices = @transform_0, window_bounds = array<i64: 16, 256>}, {pipeline_mode = #tpu.pipeline_mode<double_buffered>, transform_indices = @transform_1, window_bounds = array<i64: 256, 256>}, {transform_indices = @transform_2, window_bounds = array<i64: 2, 256>}, {pipeline_mode = #tpu.pipeline_mode<double_buffered>, transform_indices = @transform_3, window_bounds = array<i64: 256, 128>}, {pipeline_mode = #tpu.pipeline_mode<synchronous>, transform_indices = @transform_4, window_bounds = array<i64: 1, 128>}, {pipeline_mode = #tpu.pipeline_mode<synchronous>, transform_indices = @transform_5, window_bounds = array<i64: 16, 128>}]} {
    %c0_i32 = arith.constant 0 : i32
    %0 = arith.cmpi eq, %arg0, %c0_i32 : i32
    %1 = arith.extui %0 : i1 to i32
    %c0_i32_0 = arith.constant 0 : i32
    %2 = arith.cmpi ne, %1, %c0_i32_0 : i32
    scf.if %2 {
      %c0_21 = arith.constant 0 : index
      %c0_22 = arith.constant 0 : index
      %43 = vector.load %arg5[%c0_21, %c0_22] : memref<1x128xf32, #tpu.memory_space<vmem>>, vector<1x128xf32>
      %44 = vector.shape_cast %43 : vector<1x128xf32> to vector<1x128xf32>
      %45 = vector.broadcast %44 : vector<1x128xf32> to vector<16x128xf32>
      %c0_23 = arith.constant 0 : index
      %c0_24 = arith.constant 0 : index
      %46 = vector.load %arg7[%c0_23, %c0_24] : memref<16x128xf32, #tpu.memory_space<vmem>>, vector<16x128xf32>
      tpu.vector_store %arg7[%c0_23, %c0_24], %45 {strides = array<i32>} : memref<16x128xf32, #tpu.memory_space<vmem>>, vector<16x128xf32>,
    } else {
    }
    %c0 = arith.constant 0 : index
    %c0_1 = arith.constant 0 : index
    %3 = vector.load %arg1[%c0, %c0_1] : memref<16x256xbf16, #tpu.memory_space<vmem>>, vector<16x256xbf16>
    %c0_2 = arith.constant 0 : index
    %c0_3 = arith.constant 0 : index
    %4 = vector.load %arg2[%c0_2, %c0_3] : memref<256x256xbf16, #tpu.memory_space<vmem>>, vector<256x256xbf16>
    %cst = arith.constant dense<0.000000e+00> : vector<16x256xf32>
    %5 = tpu.matmul %3, %4, %cst {dimension_numbers = #tpu.dot_dimension_numbers<[1], [0], [0], [1], [0, 0, 1, 1], [], []>} : vector<16x256xbf16>, vector<256x256xbf16>, vector<16x256xf32> -> vector<16x256xf32>
    %cst_4 = arith.constant dense<0.000000e+00> : vector<256xf32>
    %6 = vector.multi_reduction <add>, %5, %cst_4 [0] : vector<16x256xf32> to vector<256xf32>
    %7 = vector.shape_cast %6 : vector<256xf32> to vector<1x256xf32>
    %cst_5 = arith.constant 1.250000e-01 : f32
    %8 = vector.broadcast %cst_5 : f32 to vector<1x256xf32>
    %9 = arith.mulf %7, %8 : vector<1x256xf32>
    %10 = arith.mulf %5, %5 : vector<16x256xf32>
    %cst_6 = arith.constant dense<0.000000e+00> : vector<256xf32>
    %11 = vector.multi_reduction <add>, %10, %cst_6 [0] : vector<16x256xf32> to vector<256xf32>
    %12 = vector.shape_cast %11 : vector<256xf32> to vector<1x256xf32>
    %cst_7 = arith.constant 1.250000e-01 : f32
    %13 = vector.broadcast %cst_7 : f32 to vector<1x256xf32>
    %14 = arith.mulf %12, %13 : vector<1x256xf32>
    %15 = arith.mulf %9, %9 : vector<1x256xf32>
    %16 = arith.subf %14, %15 : vector<1x256xf32>
    %cst_8 = arith.constant 0.000000e+00 : f32
    %17 = vector.broadcast %cst_8 : f32 to vector<1x256xf32>
    %18 = arith.maximumf %16, %17 : vector<1x256xf32>
    %c0_9 = arith.constant 0 : index
    %c0_10 = arith.constant 0 : index
    %19 = vector.load %arg3[%c0_9, %c0_10] : memref<2x256xf32, #tpu.memory_space<vmem>>, vector<2x256xf32>
    %20 = vector.extract_strided_slice %19 {offsets = [0, 0], sizes = [1, 256], strides = [1, 1]} : vector<2x256xf32> to vector<1x256xf32>
    %21 = vector.extract_strided_slice %19 {offsets = [1, 0], sizes = [1, 256], strides = [1, 1]} : vector<2x256xf32> to vector<1x256xf32>
    %cst_11 = arith.constant 9.99999974E-6 : f32
    %22 = vector.broadcast %cst_11 : f32 to vector<1x256xf32>
    %23 = arith.addf %18, %22 : vector<1x256xf32>
    %24 = math.rsqrt %23 : vector<1x256xf32>
    %25 = arith.mulf %20, %24 : vector<1x256xf32>
    %26 = arith.mulf %9, %25 : vector<1x256xf32>
    %27 = arith.subf %21, %26 : vector<1x256xf32>
    %28 = vector.broadcast %25 : vector<1x256xf32> to vector<16x256xf32>
    %29 = arith.mulf %5, %28 : vector<16x256xf32>
    %30 = vector.broadcast %27 : vector<1x256xf32> to vector<16x256xf32>
    %31 = arith.addf %29, %30 : vector<16x256xf32>
    %cst_12 = arith.constant 0.000000e+00 : f32
    %32 = vector.broadcast %cst_12 : f32 to vector<16x256xf32>
    %33 = arith.maximumf %31, %32 : vector<16x256xf32>
    %c0_13 = arith.constant 0 : index
    %c0_14 = arith.constant 0 : index
    %34 = vector.load %arg7[%c0_13, %c0_14] : memref<16x128xf32, #tpu.memory_space<vmem>>, vector<16x128xf32>
    %35 = arith.truncf %33 : vector<16x256xf32> to vector<16x256xbf16>
    %c0_15 = arith.constant 0 : index
    %c0_16 = arith.constant 0 : index
    %36 = vector.load %arg4[%c0_15, %c0_16] : memref<256x128xbf16, #tpu.memory_space<vmem>>, vector<256x128xbf16>
    %cst_17 = arith.constant dense<0.000000e+00> : vector<16x128xf32>
    %37 = tpu.matmul %35, %36, %cst_17 {dimension_numbers = #tpu.dot_dimension_numbers<[1], [0], [0], [1], [0, 0, 1, 1], [], []>} : vector<16x256xbf16>, vector<256x128xbf16>, vector<16x128xf32> -> vector<16x128xf32>
    %38 = arith.addf %34, %37 : vector<16x128xf32>
    %c0_18 = arith.constant 0 : index
    %c0_19 = arith.constant 0 : index
    %39 = vector.load %arg7[%c0_18, %c0_19] : memref<16x128xf32, #tpu.memory_space<vmem>>, vector<16x128xf32>
    tpu.vector_store %arg7[%c0_18, %c0_19], %38 {strides = array<i32>} : memref<16x128xf32, #tpu.memory_space<vmem>>, vector<16x128xf32>,
    %c1_i32 = arith.constant 1 : i32
    %40 = arith.cmpi eq, %arg0, %c1_i32 : i32
    %41 = arith.extui %40 : i1 to i32
    %c0_i32_20 = arith.constant 0 : i32
    %42 = arith.cmpi ne, %41, %c0_i32_20 : i32
    scf.if %42 {
      %c0_21 = arith.constant 0 : index
      %c0_22 = arith.constant 0 : index
      %43 = vector.load %arg7[%c0_21, %c0_22] : memref<16x128xf32, #tpu.memory_space<vmem>>, vector<16x128xf32>
      %44 = arith.mulf %43, %43 : vector<16x128xf32>
      %cst_23 = arith.constant dense<0.000000e+00> : vector<16xf32>
      %45 = vector.multi_reduction <add>, %44, %cst_23 [1] : vector<16x128xf32> to vector<16xf32>
      %46 = vector.shape_cast %45 : vector<16xf32> to vector<16x1xf32>
      %cst_24 = arith.constant 1.000000e-24 : f32
      %47 = vector.broadcast %cst_24 : f32 to vector<16x1xf32>
      %48 = arith.maximumf %46, %47 : vector<16x1xf32>
      %49 = math.rsqrt %48 : vector<16x1xf32>
      %50 = vector.broadcast %49 : vector<16x1xf32> to vector<16x128xf32>
      %51 = arith.mulf %43, %50 : vector<16x128xf32>
      %c0_25 = arith.constant 0 : index
      %c0_26 = arith.constant 0 : index
      %52 = vector.load %arg6[%c0_25, %c0_26] : memref<16x128xf32, #tpu.memory_space<vmem>>, vector<16x128xf32>
      tpu.vector_store %arg6[%c0_25, %c0_26], %51 {strides = array<i32>} : memref<16x128xf32, #tpu.memory_space<vmem>>, vector<16x128xf32>,
    } else {
    }
    return
  }
  func.func @transform_0(%arg0: i32) -> (i32, i32) {
    %c0_i32 = arith.constant 0 : i32
    %c0_i32_0 = arith.constant 0 : i32
    %c0_i32_1 = arith.constant 0 : i32
    return %c0_i32, %c0_i32_0 : i32, i32
  }
  func.func @transform_1(%arg0: i32) -> (i32, i32) {
    %c0_i32 = arith.constant 0 : i32
    %c0_i32_0 = arith.constant 0 : i32
    return %c0_i32, %arg0 : i32, i32
  }
  func.func @transform_2(%arg0: i32) -> (i32, i32) {
    %c0_i32 = arith.constant 0 : i32
    %c0_i32_0 = arith.constant 0 : i32
    return %c0_i32, %arg0 : i32, i32
  }
  func.func @transform_3(%arg0: i32) -> (i32, i32) {
    %c0_i32 = arith.constant 0 : i32
    %c0_i32_0 = arith.constant 0 : i32
    return %arg0, %c0_i32 : i32, i32
  }
  func.func @transform_4(%arg0: i32) -> (i32, i32) {
    %c0_i32 = arith.constant 0 : i32
    %c0_i32_0 = arith.constant 0 : i32
    %c0_i32_1 = arith.constant 0 : i32
    return %c0_i32, %c0_i32_0 : i32, i32
  }
  func.func @transform_5(%arg0: i32) -> (i32, i32) {
    %c0_i32 = arith.constant 0 : i32
    %c0_i32_0 = arith.constant 0 : i32
    %c0_i32_1 = arith.constant 0 : i32
    return %c0_i32, %c0_i32_0 : i32, i32
  }
}

module attributes {stable_mosaic.version = 11 : i64} {
  func.func @projection_kernel(%arg0: i32, %arg1: memref<16x256xbf16, #tpu.memory_space<vmem>>, %arg2: memref<256x256xbf16, #tpu.memory_space<vmem>>, %arg3: memref<2x256xf32, #tpu.memory_space<vmem>>, %arg4: memref<256x128xbf16, #tpu.memory_space<vmem>>, %arg5: memref<1x128xf32, #tpu.memory_space<vmem>>, %arg6: memref<16x128xf32, #tpu.memory_space<vmem>>, %arg7: memref<16x128xf32, #tpu.memory_space<vmem>>) attributes {dimension_semantics = [#tpu.dimension_semantics<arbitrary>], iteration_bounds = array<i64: 2>, scalar_prefetch = 0 : i64, scratch_operands = 1 : i64, tpu.core_type = #tpu.core_type<tc>, window_params = [{pipeline_mode = #tpu.pipeline_mode<synchronous>, transform_indices = @transform_0, window_bounds = array<i64: 16, 256>}, {transform_indices = @transform_1, window_bounds = array<i64: 256, 256>}, {transform_indices = @transform_2, window_bounds = array<i64: 2, 256>}, {transform_indices = @transform_3, window_bounds = array<i64: 256, 128>}, {pipeline_mode = #tpu.pipeline_mode<synchronous>, transform_indices = @transform_4, window_bounds = array<i64: 1, 128>}, {pipeline_mode = #tpu.pipeline_mode<synchronous>, transform_indices = @transform_5, window_bounds = array<i64: 16, 128>}]} {
    %c0_i32 = arith.constant 0 : i32
    %0 = arith.cmpi eq, %arg0, %c0_i32 : i32
    %1 = arith.extui %0 : i1 to i32
    %c0_i32_0 = arith.constant 0 : i32
    %2 = arith.cmpi ne, %1, %c0_i32_0 : i32
    scf.if %2 {
      %c0_21 = arith.constant 0 : index
      %c0_22 = arith.constant 0 : index
      %43 = vector.load %arg5[%c0_21, %c0_22] : memref<1x128xf32, #tpu.memory_space<vmem>>, vector<1x128xf32>
      %44 = vector.shape_cast %43 : vector<1x128xf32> to vector<1x128xf32>
      %45 = vector.broadcast %44 : vector<1x128xf32> to vector<16x128xf32>
      %c0_23 = arith.constant 0 : index
      %c0_24 = arith.constant 0 : index
      %46 = vector.load %arg7[%c0_23, %c0_24] : memref<16x128xf32, #tpu.memory_space<vmem>>, vector<16x128xf32>
      tpu.vector_store %arg7[%c0_23, %c0_24], %45 {strides = array<i32>} : memref<16x128xf32, #tpu.memory_space<vmem>>, vector<16x128xf32>,
    } else {
    }
    %c0 = arith.constant 0 : index
    %c0_1 = arith.constant 0 : index
    %3 = vector.load %arg1[%c0, %c0_1] : memref<16x256xbf16, #tpu.memory_space<vmem>>, vector<16x256xbf16>
    %c0_2 = arith.constant 0 : index
    %c0_3 = arith.constant 0 : index
    %4 = vector.load %arg2[%c0_2, %c0_3] : memref<256x256xbf16, #tpu.memory_space<vmem>>, vector<256x256xbf16>
    %cst = arith.constant dense<0.000000e+00> : vector<16x256xf32>
    %5 = tpu.matmul %3, %4, %cst {dimension_numbers = #tpu.dot_dimension_numbers<[1], [0], [0], [1], [0, 0, 1, 1], [], []>} : vector<16x256xbf16>, vector<256x256xbf16>, vector<16x256xf32> -> vector<16x256xf32>
    %cst_4 = arith.constant dense<0.000000e+00> : vector<256xf32>
    %6 = vector.multi_reduction <add>, %5, %cst_4 [0] : vector<16x256xf32> to vector<256xf32>
    %7 = vector.shape_cast %6 : vector<256xf32> to vector<1x256xf32>
    %cst_5 = arith.constant 1.250000e-01 : f32
    %8 = vector.broadcast %cst_5 : f32 to vector<1x256xf32>
    %9 = arith.mulf %7, %8 : vector<1x256xf32>
    %10 = arith.mulf %5, %5 : vector<16x256xf32>
    %cst_6 = arith.constant dense<0.000000e+00> : vector<256xf32>
    %11 = vector.multi_reduction <add>, %10, %cst_6 [0] : vector<16x256xf32> to vector<256xf32>
    %12 = vector.shape_cast %11 : vector<256xf32> to vector<1x256xf32>
    %cst_7 = arith.constant 1.250000e-01 : f32
    %13 = vector.broadcast %cst_7 : f32 to vector<1x256xf32>
    %14 = arith.mulf %12, %13 : vector<1x256xf32>
    %15 = arith.mulf %9, %9 : vector<1x256xf32>
    %16 = arith.subf %14, %15 : vector<1x256xf32>
    %cst_8 = arith.constant 0.000000e+00 : f32
    %17 = vector.broadcast %cst_8 : f32 to vector<1x256xf32>
    %18 = arith.maximumf %16, %17 : vector<1x256xf32>
    %c0_9 = arith.constant 0 : index
    %c0_10 = arith.constant 0 : index
    %19 = vector.load %arg3[%c0_9, %c0_10] : memref<2x256xf32, #tpu.memory_space<vmem>>, vector<2x256xf32>
    %20 = vector.extract_strided_slice %19 {offsets = [0, 0], sizes = [1, 256], strides = [1, 1]} : vector<2x256xf32> to vector<1x256xf32>
    %21 = vector.extract_strided_slice %19 {offsets = [1, 0], sizes = [1, 256], strides = [1, 1]} : vector<2x256xf32> to vector<1x256xf32>
    %cst_11 = arith.constant 9.99999974E-6 : f32
    %22 = vector.broadcast %cst_11 : f32 to vector<1x256xf32>
    %23 = arith.addf %18, %22 : vector<1x256xf32>
    %24 = math.rsqrt %23 : vector<1x256xf32>
    %25 = arith.mulf %20, %24 : vector<1x256xf32>
    %26 = arith.mulf %9, %25 : vector<1x256xf32>
    %27 = arith.subf %21, %26 : vector<1x256xf32>
    %28 = vector.broadcast %25 : vector<1x256xf32> to vector<16x256xf32>
    %29 = arith.mulf %5, %28 : vector<16x256xf32>
    %30 = vector.broadcast %27 : vector<1x256xf32> to vector<16x256xf32>
    %31 = arith.addf %29, %30 : vector<16x256xf32>
    %cst_12 = arith.constant 0.000000e+00 : f32
    %32 = vector.broadcast %cst_12 : f32 to vector<16x256xf32>
    %33 = arith.maximumf %31, %32 : vector<16x256xf32>
    %c0_13 = arith.constant 0 : index
    %c0_14 = arith.constant 0 : index
    %34 = vector.load %arg7[%c0_13, %c0_14] : memref<16x128xf32, #tpu.memory_space<vmem>>, vector<16x128xf32>
    %35 = arith.truncf %33 : vector<16x256xf32> to vector<16x256xbf16>
    %c0_15 = arith.constant 0 : index
    %c0_16 = arith.constant 0 : index
    %36 = vector.load %arg4[%c0_15, %c0_16] : memref<256x128xbf16, #tpu.memory_space<vmem>>, vector<256x128xbf16>
    %cst_17 = arith.constant dense<0.000000e+00> : vector<16x128xf32>
    %37 = tpu.matmul %35, %36, %cst_17 {dimension_numbers = #tpu.dot_dimension_numbers<[1], [0], [0], [1], [0, 0, 1, 1], [], []>} : vector<16x256xbf16>, vector<256x128xbf16>, vector<16x128xf32> -> vector<16x128xf32>
    %38 = arith.addf %34, %37 : vector<16x128xf32>
    %c0_18 = arith.constant 0 : index
    %c0_19 = arith.constant 0 : index
    %39 = vector.load %arg7[%c0_18, %c0_19] : memref<16x128xf32, #tpu.memory_space<vmem>>, vector<16x128xf32>
    tpu.vector_store %arg7[%c0_18, %c0_19], %38 {strides = array<i32>} : memref<16x128xf32, #tpu.memory_space<vmem>>, vector<16x128xf32>,
    %c1_i32 = arith.constant 1 : i32
    %40 = arith.cmpi eq, %arg0, %c1_i32 : i32
    %41 = arith.extui %40 : i1 to i32
    %c0_i32_20 = arith.constant 0 : i32
    %42 = arith.cmpi ne, %41, %c0_i32_20 : i32
    scf.if %42 {
      %c0_21 = arith.constant 0 : index
      %c0_22 = arith.constant 0 : index
      %43 = vector.load %arg7[%c0_21, %c0_22] : memref<16x128xf32, #tpu.memory_space<vmem>>, vector<16x128xf32>
      %44 = arith.mulf %43, %43 : vector<16x128xf32>
      %cst_23 = arith.constant dense<0.000000e+00> : vector<16xf32>
      %45 = vector.multi_reduction <add>, %44, %cst_23 [1] : vector<16x128xf32> to vector<16xf32>
      %46 = vector.shape_cast %45 : vector<16xf32> to vector<16x1xf32>
      %cst_24 = arith.constant 1.000000e-24 : f32
      %47 = vector.broadcast %cst_24 : f32 to vector<16x1xf32>
      %48 = arith.maximumf %46, %47 : vector<16x1xf32>
      %49 = math.rsqrt %48 : vector<16x1xf32>
      %50 = vector.broadcast %49 : vector<16x1xf32> to vector<16x128xf32>
      %51 = arith.mulf %43, %50 : vector<16x128xf32>
      %c0_25 = arith.constant 0 : index
      %c0_26 = arith.constant 0 : index
      %52 = vector.load %arg6[%c0_25, %c0_26] : memref<16x128xf32, #tpu.memory_space<vmem>>, vector<16x128xf32>
      tpu.vector_store %arg6[%c0_25, %c0_26], %51 {strides = array<i32>} : memref<16x128xf32, #tpu.memory_space<vmem>>, vector<16x128xf32>,
    } else {
    }
    return
  }
  func.func @transform_0(%arg0: i32) -> (i32, i32) {
    %c0_i32 = arith.constant 0 : i32
    %c0_i32_0 = arith.constant 0 : i32
    %c0_i32_1 = arith.constant 0 : i32
    return %c0_i32, %c0_i32_0 : i32, i32
  }
  func.func @transform_1(%arg0: i32) -> (i32, i32) {
    %c0_i32 = arith.constant 0 : i32
    %c0_i32_0 = arith.constant 0 : i32
    return %c0_i32, %arg0 : i32, i32
  }
  func.func @transform_2(%arg0: i32) -> (i32, i32) {
    %c0_i32 = arith.constant 0 : i32
    %c0_i32_0 = arith.constant 0 : i32
    return %c0_i32, %arg0 : i32, i32
  }
  func.func @transform_3(%arg0: i32) -> (i32, i32) {
    %c0_i32 = arith.constant 0 : i32
    %c0_i32_0 = arith.constant 0 : i32
    return %arg0, %c0_i32 : i32, i32
  }
  func.func @transform_4(%arg0: i32) -> (i32, i32) {
    %c0_i32 = arith.constant 0 : i32
    %c0_i32_0 = arith.constant 0 : i32
    %c0_i32_1 = arith.constant 0 : i32
    return %c0_i32, %c0_i32_0 : i32, i32
  }
  func.func @transform_5(%arg0: i32) -> (i32, i32) {
    %c0_i32 = arith.constant 0 : i32
    %c0_i32_0 = arith.constant 0 : i32
    %c0_i32_1 = arith.constant 0 : i32
    return %c0_i32, %c0_i32_0 : i32, i32
  }
}

</mosaic_0001>

<llo_original>
// kernel: tpu_custom_call.1
$region0: #{tpu_custom_call.1}
  #allocation0 [shape = 'u32[]', space=smem, size = 0x4, offset = 0x4, fixed_abs, tag = 'smem constant byte address 0x4 - core index']
  #allocation1 [shape = 'u32[144,128]{1,0:T(1,128)}', space=vmem, size = 0x12000, scoped, tag = 'internal scratch']
  #allocation2 [shape = 'f32[16,128]{1,0:T(8,128)}', space=vmem, size = 0x2000, scoped, tag = 'scratch operand']
  %s0 = inlined_call_operand.hbm [shape: bf16[16,256], index: 0, kind: input, shape index: {}]
  %s1 = inlined_call_operand.hbm [shape: bf16[256,512], index: 1, kind: input, shape index: {}]
  %s2 = inlined_call_operand.hbm [shape: f32[2,512], index: 2, kind: input, shape index: {}]
  %s3 = inlined_call_operand.hbm [shape: bf16[512,128], index: 3, kind: input, shape index: {}]
  %s4 = inlined_call_operand.vmem [shape: f32[1,128], index: 4, kind: input, shape index: {}]
  %s5 = inlined_call_operand.hbm [shape: f32[16,128], index: 5, kind: output, shape index: {}]
  %s6 = sld [smem:[#allocation0]]
  $region77: #{tpu_custom_call.1} parent=0
    _
  %s8 = ssub.s32 1, %s6
  %s9 = scalar_select 0, %s8, %s6
  $region1: #{tpu_custom_call.1} parent=0
    #allocation3 [shape = 'u8[8192]{0}', space=vmem, size = 0x2000, scoped, tag = 'input window, operand 0, single buffered']
    #allocation4 [shape = 's32[2]{0}', space=sflag, size = 0x8, scoped, tag = 'scoped memory for tpu_custom_call.1']
    #allocation5 [shape = 's32[2]{0}', space=sflag, size = 0x8, scoped, tag = 'scoped memory for tpu_custom_call.1']
    #allocation6 [shape = 'u8[262144]{0}', space=vmem, size = 0x40000, scoped, tag = 'input window, operand 1']
    #allocation7 [shape = 's32[2]{0}', space=sflag, size = 0x8, scoped, tag = 'scoped memory for tpu_custom_call.1']
    #allocation8 [shape = 'u8[4096]{0}', space=vmem, size = 0x1000, scoped, tag = 'input window, operand 2']
    #allocation9 [shape = 'u8[131072]{0}', space=vmem, size = 0x20000, scoped, tag = 'input window, operand 3']
    #allocation10 [shape = 's32[2]{0}', space=sflag, size = 0x8, scoped, tag = 'scoped memory for tpu_custom_call.1']
    #allocation11 [shape = 'u8[8192]{0}', space=vmem, size = 0x2000, scoped, tag = 'output window, operand 0, single buffered']
    %10 = vsyncpa [#allocation4], 0
    %11 = vsyncpa [#allocation7], 0
    %s12 = scalar_lea.sflag [#allocation7], 1
    %13 = vsyncpa %s12, 0
    %14 = vsyncpa [#allocation10], 0
    %s15 = scalar_lea.sflag [#allocation10], 1
    %16 = vsyncpa %s15, 0
    %17 = vsyncpa [#allocation5], 0
    loop: start=0, step=1, limit=4
    $region2: #{tpu_custom_call.1} parent=1 // loop_pre_header
      _
    $region3: #{tpu_custom_call.1} parent=1 // loop_header
      %s19 = sphi 0, %s23
      %p20 = scmp.ge.s32.totalorder %s19, 4
      %s27 = sphi 0, %s27
      %s29 = sphi 0, %s27
      %s30 = sphi 0, %s29
      %s44 = sphi 0, %s30
      %s50 = sphi 0, %s52
      %s53 = sphi 0, %s50
      %s54 = sphi 0, %s53
      %s70 = sphi 0, %s54
      %s76 = sphi 0, %s78
      %s79 = sphi 0, %s76
      %s80 = sphi 0, %s79
      %s96 = sphi 0, %s80
      %s102 = sphi 0, %s104
      %s105 = sphi 0, %s102
      %s106 = sphi 0, %s105
      %s122 = sphi 0, %s106
      %s126 = sphi 0, %s126
      %s128 = sphi 0, %s126
      %s129 = sphi 0, %s128
      %s143 = sphi 0, %s129
      %s147 = sphi 0, %s147
      %s149 = sphi 0, %s147
      %s150 = sphi 0, %s149
      %s164 = sphi 0, %s150
    $region4: #{tpu_custom_call.1} parent=1 // loop_header_branch
      %22 = sbr.rel (%p20) target = $region8
    $region5: #{tpu_custom_call.1} parent=1 // loop_body
      %s24 = ssub.s32 %s19, 1
      %s25 = ssub.s32 %s19, 2
      %s26 = sadd.s32 %s19, 1
      %s28 = sadd.s32 %s27, 1
      %p31 = scmp.eq.s32.totalorder %s19, 1
      %p32 = scmp.ne.s32.totalorder %s27, %s29
      %p33 = scmp.eq.s32.totalorder %s19, 0
      %p34 = por %p32, %p33
      %p35 = scmp.ne.s32.totalorder %s27, %s29
      %p36 = scmp.eq.s32.totalorder %s24, 1
      %p37 = por %p35, %p36
      %p38 = scmp.ne.s32.totalorder %s29, %s30
      %p39 = scmp.eq.s32.totalorder %s24, 0
      %p40 = por %p38, %p39
      %p41 = scmp.ne.s32.totalorder %s29, %s30
      %p42 = scmp.eq.s32.totalorder %s25, 1
      %p43 = por %p41, %p42
      %p45 = scmp.ne.s32.totalorder %s30, %s44
      %p46 = scmp.eq.s32.totalorder %s25, 0
      %p47 = por %p45, %p46
      %s48 = ssub.s32 %s19, %s26
      %p49 = scmp.eq.s32.totalorder %s48, 0
      %s51 = sadd.s32 %s50, 1
      %s52 = scalar_select %p49, %s50, %s51
      %p55 = pneg %p49
      %p56 = scmp.eq.s32.totalorder %s19, 1
      %p57 = por %p55, %p56
      %p58 = scmp.ne.s32.totalorder %s50, %s53
      %p59 = scmp.eq.s32.totalorder %s19, 0
      %p60 = por %p58, %p59
      %p61 = scmp.ne.s32.totalorder %s50, %s53
      %p62 = scmp.eq.s32.totalorder %s24, 1
      %p63 = por %p61, %p62
      %p64 = scmp.ne.s32.totalorder %s53, %s54
      %p65 = scmp.eq.s32.totalorder %s24, 0
      %p66 = por %p64, %p65
      %p67 = scmp.ne.s32.totalorder %s53, %s54
      %p68 = scmp.eq.s32.totalorder %s25, 1
      %p69 = por %p67, %p68
      %p71 = scmp.ne.s32.totalorder %s54, %s70
      %p72 = scmp.eq.s32.totalorder %s25, 0
      %p73 = por %p71, %p72
      %s74 = ssub.s32 %s19, %s26
      %p75 = scmp.eq.s32.totalorder %s74, 0
      %s77 = sadd.s32 %s76, 1
      %s78 = scalar_select %p75, %s76, %s77
      %p81 = pneg %p75
      %p82 = scmp.eq.s32.totalorder %s19, 1
      %p83 = por %p81, %p82
      %p84 = scmp.ne.s32.totalorder %s76, %s79
      %p85 = scmp.eq.s32.totalorder %s19, 0
      %p86 = por %p84, %p85
      %p87 = scmp.ne.s32.totalorder %s76, %s79
      %p88 = scmp.eq.s32.totalorder %s24, 1
      %p89 = por %p87, %p88
      %p90 = scmp.ne.s32.totalorder %s79, %s80
      %p91 = scmp.eq.s32.totalorder %s24, 0
      %p92 = por %p90, %p91
      %p93 = scmp.ne.s32.totalorder %s79, %s80
      %p94 = scmp.eq.s32.totalorder %s25, 1
      %p95 = por %p93, %p94
      %p97 = scmp.ne.s32.totalorder %s80, %s96
      %p98 = scmp.eq.s32.totalorder %s25, 0
      %p99 = por %p97, %p98
      %s100 = ssub.s32 %s19, %s26
      %p101 = scmp.eq.s32.totalorder %s100, 0
      %s103 = sadd.s32 %s102, 1
      %s104 = scalar_select %p101, %s102, %s103
      %p107 = pneg %p101
      %p108 = scmp.eq.s32.totalorder %s19, 1
      %p109 = por %p107, %p108
      %p110 = scmp.ne.s32.totalorder %s102, %s105
      %p111 = scmp.eq.s32.totalorder %s19, 0
      %p112 = por %p110, %p111
      %p113 = scmp.ne.s32.totalorder %s102, %s105
      %p114 = scmp.eq.s32.totalorder %s24, 1
      %p115 = por %p113, %p114
      %p116 = scmp.ne.s32.totalorder %s105, %s106
      %p117 = scmp.eq.s32.totalorder %s24, 0
      %p118 = por %p116, %p117
      %p119 = scmp.ne.s32.totalorder %s105, %s106
      %p120 = scmp.eq.s32.totalorder %s25, 1
      %p121 = por %p119, %p120
      %p123 = scmp.ne.s32.totalorder %s106, %s122
      %p124 = scmp.eq.s32.totalorder %s25, 0
      %p125 = por %p123, %p124
      %s127 = sadd.s32 %s126, 1
      %p130 = scmp.eq.s32.totalorder %s19, 1
      %p131 = scmp.ne.s32.totalorder %s126, %s128
      %p132 = scmp.eq.s32.totalorder %s19, 0
      %p133 = por %p131, %p132
      %p134 = scmp.ne.s32.totalorder %s126, %s128
      %p135 = scmp.eq.s32.totalorder %s24, 1
      %p136 = por %p134, %p135
      %p137 = scmp.ne.s32.totalorder %s128, %s129
      %p138 = scmp.eq.s32.totalorder %s24, 0
      %p139 = por %p137, %p138
      %p140 = scmp.ne.s32.totalorder %s128, %s129
      %p141 = scmp.eq.s32.totalorder %s25, 1
      %p142 = por %p140, %p141
      %p144 = scmp.ne.s32.totalorder %s129, %s143
      %p145 = scmp.eq.s32.totalorder %s25, 0
      %p146 = por %p144, %p145
      %s148 = sadd.s32 %s147, 1
      %p151 = scmp.eq.s32.totalorder %s19, 1
      %p152 = scmp.ne.s32.totalorder %s147, %s149
      %p153 = scmp.eq.s32.totalorder %s19, 0
      %p154 = por %p152, %p153
      %p155 = scmp.ne.s32.totalorder %s147, %s149
      %p156 = scmp.eq.s32.totalorder %s24, 1
      %p157 = por %p155, %p156
      %p158 = scmp.ne.s32.totalorder %s149, %s150
      %p159 = scmp.eq.s32.totalorder %s24, 0
      %p160 = por %p158, %p159
      %p161 = scmp.ne.s32.totalorder %s149, %s150
      %p162 = scmp.eq.s32.totalorder %s25, 1
      %p163 = por %p161, %p162
      %p165 = scmp.ne.s32.totalorder %s150, %s164
      %p166 = scmp.eq.s32.totalorder %s25, 0
      %p167 = por %p165, %p166
      %p168 = scmp.le.s32.totalorder 1, %s19
      %p169 = scmp.lt.s32.totalorder %s19, 3
      %p170 = pnand %p168, %p169
      %p171 = pneg %p170
      // Predicated region
      $region9: #{tpu_custom_call.1} parent=5 // pred_check
        _
      $region10: #{tpu_custom_call.1} parent=5 // pred_check_branch
        %173 = sbr.rel (%p170) target = $region12
      $region11: #{tpu_custom_call.1} parent=5 // pred_region
        %s174 = ssub.s32 %s19, 1
        // Predicated region
        $region13: #{tpu_custom_call.1} parent=11 // pred_check
          %p175 = pneg %p40
        $region14: #{tpu_custom_call.1} parent=11 // pred_check_branch
          %177 = sbr.rel (%p175) target = $region16
        $region15: #{tpu_custom_call.1} parent=11 // pred_region
          %s179 = ssub.s32 256, 256
          %180 = vsyncadd [#allocation4], %s179
          %s181 = sshll.u32 [#allocation3], 4
          %s182 = int_to_ptr.vmem [resolvable:$true] %s181
          %187 = dma.hbm_to_vmem [thread:$0]  %s0, 256, %s182, [#allocation4], 128, 128, 8
        $region16: #{tpu_custom_call.1} parent=11 // pred_fallthru
          _
        // Predicated region
        $region17: #{tpu_custom_call.1} parent=11 // pred_check
          %p188 = pneg %p139
        $region18: #{tpu_custom_call.1} parent=11 // pred_check_branch
          %190 = sbr.rel (%p188) target = $region20
        $region19: #{tpu_custom_call.1} parent=11 // pred_region
          _
        $region20: #{tpu_custom_call.1} parent=11 // pred_fallthru
          _
      $region12: #{tpu_custom_call.1} parent=5 // pred_fallthru
        _
      %p191 = scmp.lt.s32.totalorder %s19, 2
      // Predicated region
      $region21: #{tpu_custom_call.1} parent=5 // pred_check
        %p192 = pneg %p191
      $region22: #{tpu_custom_call.1} parent=5 // pred_check_branch
        %194 = sbr.rel (%p192) target = $region24
      $region23: #{tpu_custom_call.1} parent=5 // pred_region
        // Predicated region
        $region25: #{tpu_custom_call.1} parent=23 // pred_check
          %p195 = pneg %p60
        $region26: #{tpu_custom_call.1} parent=23 // pred_check_branch
          %197 = sbr.rel (%p195) target = $region28
        $region27: #{tpu_custom_call.1} parent=23 // pred_region
          %s198 = sand.u32 %s19, 1
          %s199 = scalar_lea.sflag [#allocation7], %s198
          %s200 = sand.u32 %s50, 1
          %s201 = smul.addr %s200, 256
          %s202 = scalar_lea.vmem [#allocation6], %s201
          %s203 = smul.u32 2, %s19
          %s205 = ssub.s32 4096, 4096
          %206 = vsyncadd %s199, %s205
          %s207 = smul.addr %s203, 64
          %s208 = scalar_lea.hbm %s1, %s207
          %s209 = sshll.u32 %s202, 4
          %s210 = int_to_ptr.vmem [resolvable:$true] %s209
          %215 = dma.hbm_to_vmem [thread:$0]  %s208, 4096, %s210, %s199, 256, 128, 8
        $region28: #{tpu_custom_call.1} parent=23 // pred_fallthru
          _
        // Predicated region
        $region29: #{tpu_custom_call.1} parent=23 // pred_check
          %p216 = pneg %p86
        $region30: #{tpu_custom_call.1} parent=23 // pred_check_branch
          %218 = sbr.rel (%p216) target = $region32
        $region31: #{tpu_custom_call.1} parent=23 // pred_region
          %s219 = sand.u32 %s19, 1
          %s220 = scalar_lea.sflag [#allocation7], %s219
          %s221 = sand.u32 %s76, 1
          %s222 = smul.addr %s221, 4
          %s223 = scalar_lea.vmem [#allocation8], %s222
          %s224 = smul.u32 2, %s19
          %s226 = ssub.s32 64, 64
          %227 = vsyncadd %s220, %s226
          %s228 = smul.addr %s224, 32
          %s229 = scalar_lea.hbm %s2, %s228
          %s231 = sshll.u32 %s223, 4
          %s232 = int_to_ptr.vmem [resolvable:$true] %s231
          %234 = dma.hbm_to_vmem [thread:$0]  %s229, 64, %s232, %s220
        $region32: #{tpu_custom_call.1} parent=23 // pred_fallthru
          _
        // Predicated region
        $region33: #{tpu_custom_call.1} parent=23 // pred_check
          %p235 = pneg %p112
        $region34: #{tpu_custom_call.1} parent=23 // pred_check_branch
          %237 = sbr.rel (%p235) target = $region36
        $region35: #{tpu_custom_call.1} parent=23 // pred_region
          %s238 = sand.u32 %s102, 1
          %s239 = scalar_lea.sflag [#allocation10], %s238
          %s240 = sand.u32 %s102, 1
          %s241 = smul.addr %s240, 128
          %s242 = scalar_lea.vmem [#allocation9], %s241
          %s243 = smul.u32 32, %s19
          %s245 = ssub.s32 2048, 2048
          %246 = vsyncadd %s239, %s245
          %s247 = smul.addr %s243, 64
          %s248 = scalar_lea.hbm %s3, %s247
          %s249 = sshll.u32 %s242, 4
          %s250 = int_to_ptr.vmem [resolvable:$true] %s249
          %255 = dma.hbm_to_vmem [thread:$0]  %s248, 2048, %s250, %s239, 64, 64, 4
        $region36: #{tpu_custom_call.1} parent=23 // pred_fallthru
          _
      $region24: #{tpu_custom_call.1} parent=5 // pred_fallthru
        _
      %p256 = scmp.le.s32.totalorder 1, %s19
      %p257 = scmp.lt.s32.totalorder %s19, 3
      %p258 = pnand %p256, %p257
      %p259 = pneg %p258
      // Predicated region
      $region37: #{tpu_custom_call.1} parent=5 // pred_check
        _
      $region38: #{tpu_custom_call.1} parent=5 // pred_check_branch
        %261 = sbr.rel (%p258) target = $region40
      $region39: #{tpu_custom_call.1} parent=5 // pred_region
        %s262 = ssub.s32 %s19, 1
        // Predicated region
        $region41: #{tpu_custom_call.1} parent=39 // pred_check
          %p263 = pneg %p40
        $region42: #{tpu_custom_call.1} parent=39 // pred_check_branch
          %265 = sbr.rel (%p263) target = $region44
        $region43: #{tpu_custom_call.1} parent=39 // pred_region
          %266 = dma.done [#allocation4], 256
        $region44: #{tpu_custom_call.1} parent=39 // pred_fallthru
          _
        %s267 = sand.u32 %s24, 1
        %s268 = scalar_lea.sflag [#allocation7], %s267
        %s269 = sand.u32 %s53, 1
        %s270 = smul.addr %s269, 256
        %s271 = scalar_lea.vmem [#allocation6], %s270
        // Predicated region
        $region45: #{tpu_custom_call.1} parent=39 // pred_check
          %p272 = pneg %p66
        $region46: #{tpu_custom_call.1} parent=39 // pred_check_branch
          %274 = sbr.rel (%p272) target = $region48
        $region47: #{tpu_custom_call.1} parent=39 // pred_region
          %275 = dma.done %s268, 4096
        $region48: #{tpu_custom_call.1} parent=39 // pred_fallthru
          _
        %s276 = sand.u32 %s24, 1
        %s277 = scalar_lea.sflag [#allocation7], %s276
        %s278 = sand.u32 %s79, 1
        %s279 = smul.addr %s278, 4
        %s280 = scalar_lea.vmem [#allocation8], %s279
        // Predicated region
        $region49: #{tpu_custom_call.1} parent=39 // pred_check
          %p281 = pneg %p92
        $region50: #{tpu_custom_call.1} parent=39 // pred_check_branch
          %283 = sbr.rel (%p281) target = $region52
        $region51: #{tpu_custom_call.1} parent=39 // pred_region
          %284 = dma.done %s277, 64
        $region52: #{tpu_custom_call.1} parent=39 // pred_fallthru
          _
        %s285 = sand.u32 %s105, 1
        %s286 = scalar_lea.sflag [#allocation10], %s285
        %s287 = sand.u32 %s105, 1
        %s288 = smul.addr %s287, 128
        %s289 = scalar_lea.vmem [#allocation9], %s288
        // Predicated region
        $region53: #{tpu_custom_call.1} parent=39 // pred_check
          %p290 = pneg %p118
        $region54: #{tpu_custom_call.1} parent=39 // pred_check_branch
          %292 = sbr.rel (%p290) target = $region56
        $region55: #{tpu_custom_call.1} parent=39 // pred_region
          %293 = dma.done %s286, 2048
        $region56: #{tpu_custom_call.1} parent=39 // pred_fallthru
          _
        %p294 = pneg %p40
        %p295 = pneg %p37
        %s296 = sand.u32 %s24, 1
        %s297 = scalar_lea.sflag [#allocation7], %s296
        %s298 = sand.u32 %s53, 1
        %s299 = smul.addr %s298, 256
        %s300 = scalar_lea.vmem [#allocation6], %s299
        %p301 = pneg %p66
        %p302 = pneg %p63
        %s303 = sand.u32 %s24, 1
        %s304 = scalar_lea.sflag [#allocation7], %s303
        %s305 = sand.u32 %s79, 1
        %s306 = smul.addr %s305, 4
        %s307 = scalar_lea.vmem [#allocation8], %s306
        %p308 = pneg %p92
        %p309 = pneg %p89
        %s310 = sand.u32 %s105, 1
        %s311 = scalar_lea.sflag [#allocation10], %s310
        %s312 = sand.u32 %s105, 1
        %s313 = smul.addr %s312, 128
        %s314 = scalar_lea.vmem [#allocation9], %s313
        %p315 = pneg %p118
        %p316 = pneg %p115
        %p317 = pneg %p139
        %p318 = pneg %p136
        %p319 = pneg %p160
        %p320 = pneg %p157
        %s321 = smul.u32 2, %s24
        %s322 = smul.u32 2, %s24
        %s323 = smul.u32 32, %s24
        %p325 = scmp.eq.s32.totalorder %s24, 0
        // Predicated region
        $region57: #{tpu_custom_call.1} parent=39 // pred_check
          %p326 = pneg %p325
        $region58: #{tpu_custom_call.1} parent=39 // pred_check_branch
          %328 = sbr.rel (%p326) target = $region60
        $region59: #{tpu_custom_call.1} parent=39 // pred_region
          %v329 = vld [vmem:[%s4] sm:$0x1]
          %v331 = vlaneseq
          %v332 = vshrl.u32 %v331, 7
          %v333 = vsub.s32 0, %v332
          %v334 = vrot.slane %v329, %v333
          %336 = vst [vmem:[#allocation2] sm:$0xff] %v334
          %337 = vst [vmem:[#allocation2 + $0x8] sm:$0xff] %v334
        $region60: #{tpu_custom_call.1} parent=39 // pred_fallthru
          _
        %v338 = vld [vmem:[#allocation3] sm:$0xff]
        %v339 = vld [vmem:[#allocation3 + $0x8] sm:$0xff]
        %v340 = vld [vmem:[%s271] sm:$0xff]
        %v341 = vld [vmem:[%s271 + $0x8] sm:$0xff]
        %v342 = vld [vmem:[%s271 + $0x10] sm:$0xff]
        %v343 = vld [vmem:[%s271 + $0x18] sm:$0xff]
        %v344 = vld [vmem:[%s271 + $0x20] sm:$0xff]
        %v345 = vld [vmem:[%s271 + $0x28] sm:$0xff]
        %v346 = vld [vmem:[%s271 + $0x30] sm:$0xff]
        %v347 = vld [vmem:[%s271 + $0x38] sm:$0xff]
        %v348 = vld [vmem:[%s271 + $0x40] sm:$0xff]
        %v349 = vld [vmem:[%s271 + $0x48] sm:$0xff]
        %v350 = vld [vmem:[%s271 + $0x50] sm:$0xff]
        %v351 = vld [vmem:[%s271 + $0x58] sm:$0xff]
        %v352 = vld [vmem:[%s271 + $0x60] sm:$0xff]
        %v353 = vld [vmem:[%s271 + $0x68] sm:$0xff]
        %v354 = vld [vmem:[%s271 + $0x70] sm:$0xff]
        %v355 = vld [vmem:[%s271 + $0x78] sm:$0xff]
        %v356 = vld [vmem:[%s271 + $0x80] sm:$0xff]
        %v357 = vld [vmem:[%s271 + $0x88] sm:$0xff]
        %v358 = vld [vmem:[%s271 + $0x90] sm:$0xff]
        %v359 = vld [vmem:[%s271 + $0x98] sm:$0xff]
        %v360 = vld [vmem:[%s271 + $0xa0] sm:$0xff]
        %v361 = vld [vmem:[%s271 + $0xa8] sm:$0xff]
        %v362 = vld [vmem:[%s271 + $0xb0] sm:$0xff]
        %v363 = vld [vmem:[%s271 + $0xb8] sm:$0xff]
        %v364 = vld [vmem:[%s271 + $0xc0] sm:$0xff]
        %v365 = vld [vmem:[%s271 + $0xc8] sm:$0xff]
        %v366 = vld [vmem:[%s271 + $0xd0] sm:$0xff]
        %v367 = vld [vmem:[%s271 + $0xd8] sm:$0xff]
        %v368 = vld [vmem:[%s271 + $0xe0] sm:$0xff]
        %v369 = vld [vmem:[%s271 + $0xe8] sm:$0xff]
        %v370 = vld [vmem:[%s271 + $0xf0] sm:$0xff]
        %v371 = vld [vmem:[%s271 + $0xf8] sm:$0xff]
        %v374 = vunpack.c.l.b16 %v338
        %v375 = vunpack.c.h.b16 %v338
        %v376 = vunpack.c.l.b16 %v339
        %v377 = vunpack.c.h.b16 %v339
        %v378 = vpack.c.b16 %v376, %v374
        %v379 = vpack.c.b16 %v377, %v375
        %v414 = vunpack.c.l.b16 %v340
        %v415 = vunpack.c.h.b16 %v340
        %v416 = vunpack.c.l.b16 %v341
        %v417 = vunpack.c.h.b16 %v341
        %v418 = vunpack.c.l.b16 %v342
        %v419 = vunpack.c.h.b16 %v342
        %v420 = vunpack.c.l.b16 %v343
        %v421 = vunpack.c.h.b16 %v343
        %v422 = vunpack.c.l.b16 %v344
        %v423 = vunpack.c.h.b16 %v344
        %v424 = vunpack.c.l.b16 %v345
        %v425 = vunpack.c.h.b16 %v345
        %v426 = vunpack.c.l.b16 %v346
        %v427 = vunpack.c.h.b16 %v346
        %v428 = vunpack.c.l.b16 %v347
        %v429 = vunpack.c.h.b16 %v347
        %v430 = vunpack.c.l.b16 %v348
        %v431 = vunpack.c.h.b16 %v348
        %v432 = vunpack.c.l.b16 %v349
        %v433 = vunpack.c.h.b16 %v349
        %v434 = vunpack.c.l.b16 %v350
        %v435 = vunpack.c.h.b16 %v350
        %v436 = vunpack.c.l.b16 %v351
        %v437 = vunpack.c.h.b16 %v351
        %v438 = vunpack.c.l.b16 %v352
        %v439 = vunpack.c.h.b16 %v352
        %v440 = vunpack.c.l.b16 %v353
        %v441 = vunpack.c.h.b16 %v353
        %v442 = vunpack.c.l.b16 %v354
        %v443 = vunpack.c.h.b16 %v354
        %v444 = vunpack.c.l.b16 %v355
        %v445 = vunpack.c.h.b16 %v355
        %v446 = vunpack.c.l.b16 %v356
        %v447 = vunpack.c.h.b16 %v356
        %v448 = vunpack.c.l.b16 %v357
        %v449 = vunpack.c.h.b16 %v357
        %v450 = vunpack.c.l.b16 %v358
        %v451 = vunpack.c.h.b16 %v358
        %v452 = vunpack.c.l.b16 %v359
        %v453 = vunpack.c.h.b16 %v359
        %v454 = vunpack.c.l.b16 %v360
        %v455 = vunpack.c.h.b16 %v360
        %v456 = vunpack.c.l.b16 %v361
        %v457 = vunpack.c.h.b16 %v361
        %v458 = vunpack.c.l.b16 %v362
        %v459 = vunpack.c.h.b16 %v362
        %v460 = vunpack.c.l.b16 %v363
        %v461 = vunpack.c.h.b16 %v363
        %v462 = vunpack.c.l.b16 %v364
        %v463 = vunpack.c.h.b16 %v364
        %v464 = vunpack.c.l.b16 %v365
        %v465 = vunpack.c.h.b16 %v365
        %v466 = vunpack.c.l.b16 %v366
        %v467 = vunpack.c.h.b16 %v366
        %v468 = vunpack.c.l.b16 %v367
        %v469 = vunpack.c.h.b16 %v367
        %v470 = vunpack.c.l.b16 %v368
        %v471 = vunpack.c.h.b16 %v368
        %v472 = vunpack.c.l.b16 %v369
        %v473 = vunpack.c.h.b16 %v369
        %v474 = vunpack.c.l.b16 %v370
        %v475 = vunpack.c.h.b16 %v370
        %v476 = vunpack.c.l.b16 %v371
        %v477 = vunpack.c.h.b16 %v371
        %v478 = vpack.c.b16 %v416, %v414
        %v479 = vpack.c.b16 %v417, %v415
        %v480 = vpack.c.b16 %v420, %v418
        %v481 = vpack.c.b16 %v421, %v419
        %v482 = vpack.c.b16 %v424, %v422
        %v483 = vpack.c.b16 %v425, %v423
        %v484 = vpack.c.b16 %v428, %v426
        %v485 = vpack.c.b16 %v429, %v427
        %v486 = vpack.c.b16 %v432, %v430
        %v487 = vpack.c.b16 %v433, %v431
        %v488 = vpack.c.b16 %v436, %v434
        %v489 = vpack.c.b16 %v437, %v435
        %v490 = vpack.c.b16 %v440, %v438
        %v491 = vpack.c.b16 %v441, %v439
        %v492 = vpack.c.b16 %v444, %v442
        %v493 = vpack.c.b16 %v445, %v443
        %v494 = vpack.c.b16 %v448, %v446
        %v495 = vpack.c.b16 %v449, %v447
        %v496 = vpack.c.b16 %v452, %v450
        %v497 = vpack.c.b16 %v453, %v451
        %v498 = vpack.c.b16 %v456, %v454
        %v499 = vpack.c.b16 %v457, %v455
        %v500 = vpack.c.b16 %v460, %v458
        %v501 = vpack.c.b16 %v461, %v459
        %v502 = vpack.c.b16 %v464, %v462
        %v503 = vpack.c.b16 %v465, %v463
        %v504 = vpack.c.b16 %v468, %v466
        %v505 = vpack.c.b16 %v469, %v467
        %v506 = vpack.c.b16 %v472, %v470
        %v507 = vpack.c.b16 %v473, %v471
        %v508 = vpack.c.b16 %v476, %v474
        %v509 = vpack.c.b16 %v477, %v475
        %542 = vmatprep.subr.bf16.mxu0 %v479
        %543 = vmatpush1.bf16.msra.mxu0 %v478
        %544 = vmatprep.subr.bf16.mxu0 %v481
        %545 = vmatpush1.bf16.msra.mxu0 %v480
        %546 = vmatprep.subr.bf16.mxu0 %v483
        %547 = vmatpush1.bf16.msra.mxu0 %v482
        %548 = vmatprep.subr.bf16.mxu0 %v485
        %549 = vmatpush1.bf16.msra.mxu0 %v484
        %550 = vmatprep.subr.bf16.mxu0 %v487
        %551 = vmatpush1.bf16.msra.mxu0 %v486
        %552 = vmatprep.subr.bf16.mxu0 %v489
        %553 = vmatpush1.bf16.msra.mxu0 %v488
        %554 = vmatprep.subr.bf16.mxu0 %v491
        %555 = vmatpush1.bf16.msra.mxu0 %v490
        %556 = vmatprep.subr.bf16.mxu0 %v493
        %557 = vmatpush1.bf16.msra.mxu0 %v492
        %558 = vmatprep.subr.bf16.mxu0 %v495
        %559 = vmatpush1.bf16.msra.mxu0 %v494
        %560 = vmatprep.subr.bf16.mxu0 %v497
        %561 = vmatpush1.bf16.msra.mxu0 %v496
        %562 = vmatprep.subr.bf16.mxu0 %v499
        %563 = vmatpush1.bf16.msra.mxu0 %v498
        %564 = vmatprep.subr.bf16.mxu0 %v501
        %565 = vmatpush1.bf16.msra.mxu0 %v500
        %566 = vmatprep.subr.bf16.mxu0 %v503
        %567 = vmatpush1.bf16.msra.mxu0 %v502
        %568 = vmatprep.subr.bf16.mxu0 %v505
        %569 = vmatpush1.bf16.msra.mxu0 %v504
        %570 = vmatprep.subr.bf16.mxu0 %v507
        %571 = vmatpush1.bf16.msra.mxu0 %v506
        %572 = vmatprep.subr.bf16.mxu0 %v509
        %573 = vmatpush1.bf16.msra.mxu0 %v508
        %574 = vmatprep.mubr.bf16.mxu0 %v379
        %575 = vmatmul.mubr.bf16.gmra.mrb[0].mxu0 %v378
        %v576 = vpop.f32.mrb[0].mxu0
        %v577 = vadd.f32 0.0, %v576
        %v578 = vpop.f32.mrb[0].mxu0
        %v579 = vadd.f32 0.0, %v578
        %v580 = vpop.f32.mrb[0].mxu0
        %v581 = vadd.f32 0.0, %v580
        %v582 = vpop.f32.mrb[0].mxu0
        %v583 = vadd.f32 0.0, %v582
        %584 = vdwg.mxu0
        %v585 = vadd.f32 %v577, %v581
        %v586 = vrot.slane %v585, 4
        %v587 = vadd.f32 %v585, %v586
        %v588 = vrot.slane %v587, 2
        %v589 = vadd.f32 %v587, %v588
        %v590 = vrot.slane %v589, 1
        %v591 = vadd.f32 %v589, %v590
        %v592 = vadd.f32 %v579, %v583
        %v593 = vrot.slane %v592, 4
        %v594 = vadd.f32 %v592, %v593
        %v595 = vrot.slane %v594, 2
        %v596 = vadd.f32 %v594, %v595
        %v597 = vrot.slane %v596, 1
        %v598 = vadd.f32 %v596, %v597
        %v599 = vmul.f32 %v591, 0.125
        %v600 = vmul.f32 %v598, 0.125
        %v601 = vmul.f32 %v577, %v577
        %v602 = vmul.f32 %v579, %v579
        %v603 = vmul.f32 %v581, %v581
        %v604 = vmul.f32 %v583, %v583
        %v605 = vadd.f32 %v601, %v603
        %v606 = vrot.slane %v605, 4
        %v607 = vadd.f32 %v605, %v606
        %v608 = vrot.slane %v607, 2
        %v609 = vadd.f32 %v607, %v608
        %v610 = vrot.slane %v609, 1
        %v611 = vadd.f32 %v609, %v610
        %v612 = vadd.f32 %v602, %v604
        %v613 = vrot.slane %v612, 4
        %v614 = vadd.f32 %v612, %v613
        %v615 = vrot.slane %v614, 2
        %v616 = vadd.f32 %v614, %v615
        %v617 = vrot.slane %v616, 1
        %v618 = vadd.f32 %v616, %v617
        %v619 = vmul.f32 %v611, 0.125
        %v620 = vmul.f32 %v618, 0.125
        %v621 = vmul.f32 %v599, %v599
        %v622 = vmul.f32 %v600, %v600
        %v623 = vsub.f32 %v619, %v621
        %v624 = vsub.f32 %v620, %v622
        %v625 = vmax.f32 %v623, 0.0
        %v626 = vmax.f32 %v624, 0.0
        %v627 = vld [vmem:[%s280] sm:$0xf]
        %v628 = vadd.f32 %v625, 1e-05
        %v629 = vadd.f32 %v626, 1e-05
        %v630 = vrsqrt.pop %v628
        %v631 = vrsqrt.pop %v629
        %v634 = vcombine.low %v630, %v631
        %v636 = vunpack.c.l.s4 1983009808
        %v637 = vunpack.c.0.s8 %v636
        %v638 = vlaneseq
        %v639 = vshrl.u32 %v638, 7
        %v640 = vsub.s32 %v637, %v639
        %v641 = vrot.slane %v634, %v640
        %v643 = vmul.f32 %v627, %v641
        %v645 = vlaneseq
        %v646 = vshrl.u32 %v645, 7
        %v647 = vsub.s32 0, %v646
        %v648 = vrot.slane %v643, %v647
        %v649 = vlaneseq
        %v650 = vshrl.u32 %v649, 7
        %v651 = vsub.s32 2, %v650
        %v652 = vrot.slane %v643, %v651
        %v655 = vmul.f32 %v599, %v648
        %v656 = vmul.f32 %v600, %v652
        %v659 = vcombine.low %v655, %v656
        %v661 = vunpack.c.l.s4 1983009808
        %v662 = vunpack.c.0.s8 %v661
        %v663 = vlaneseq
        %v664 = vshrl.u32 %v663, 7
        %v665 = vsub.s32 %v662, %v664
        %v666 = vrot.slane %v659, %v665
        %v667 = vrot.slane %v666, 7
        %v669 = vsub.f32 %v627, %v667
        %v670 = vlaneseq
        %v671 = vshrl.u32 %v670, 7
        %v672 = vsub.s32 0, %v671
        %v673 = vrot.slane %v648, %v672
        %v674 = vlaneseq
        %v675 = vshrl.u32 %v674, 7
        %v676 = vsub.s32 0, %v675
        %v677 = vrot.slane %v652, %v676
        %v678 = vmul.f32 %v577, %v673
        %v679 = vmul.f32 %v579, %v677
        %v680 = vmul.f32 %v581, %v673
        %v681 = vmul.f32 %v583, %v677
        %v683 = vlaneseq
        %v684 = vshrl.u32 %v683, 7
        %v685 = vsub.s32 1, %v684
        %v686 = vrot.slane %v669, %v685
        %v687 = vlaneseq
        %v688 = vshrl.u32 %v687, 7
        %v689 = vsub.s32 3, %v688
        %v690 = vrot.slane %v669, %v689
        %v693 = vlaneseq
        %v694 = vshrl.u32 %v693, 7
        %v695 = vsub.s32 1, %v694
        %v696 = vrot.slane %v686, %v695
        %v697 = vlaneseq
        %v698 = vshrl.u32 %v697, 7
        %v699 = vsub.s32 1, %v698
        %v700 = vrot.slane %v690, %v699
        %v701 = vadd.f32 %v678, %v696
        %v702 = vadd.f32 %v679, %v700
        %v703 = vadd.f32 %v680, %v696
        %v704 = vadd.f32 %v681, %v700
        %v705 = vmax.f32 %v701, 0.0
        %v706 = vmax.f32 %v702, 0.0
        %v707 = vmax.f32 %v703, 0.0
        %v708 = vmax.f32 %v704, 0.0
        %v709 = vld [vmem:[#allocation2] sm:$0xff]
        %v710 = vld [vmem:[#allocation2 + $0x8] sm:$0xff]
        %v711 = vpack.c.bf16 %v707, %v705
        %v712 = vpack.c.bf16 %v708, %v706
        %v713 = vld [vmem:[%s289] sm:$0xf]
        %v714 = vld [vmem:[%s289 + $0x4] sm:$0xf]
        %v715 = vld [vmem:[%s289 + $0x8] sm:$0xf]
        %v716 = vld [vmem:[%s289 + $0xc] sm:$0xf]
        %v717 = vld [vmem:[%s289 + $0x10] sm:$0xf]
        %v718 = vld [vmem:[%s289 + $0x14] sm:$0xf]
        %v719 = vld [vmem:[%s289 + $0x18] sm:$0xf]
        %v720 = vld [vmem:[%s289 + $0x1c] sm:$0xf]
        %v721 = vld [vmem:[%s289 + $0x20] sm:$0xf]
        %v722 = vld [vmem:[%s289 + $0x24] sm:$0xf]
        %v723 = vld [vmem:[%s289 + $0x28] sm:$0xf]
        %v724 = vld [vmem:[%s289 + $0x2c] sm:$0xf]
        %v725 = vld [vmem:[%s289 + $0x30] sm:$0xf]
        %v726 = vld [vmem:[%s289 + $0x34] sm:$0xf]
        %v727 = vld [vmem:[%s289 + $0x38] sm:$0xf]
        %v728 = vld [vmem:[%s289 + $0x3c] sm:$0xf]
        %v729 = vld [vmem:[%s289 + $0x40] sm:$0xf]
        %v730 = vld [vmem:[%s289 + $0x44] sm:$0xf]
        %v731 = vld [vmem:[%s289 + $0x48] sm:$0xf]
        %v732 = vld [vmem:[%s289 + $0x4c] sm:$0xf]
        %v733 = vld [vmem:[%s289 + $0x50] sm:$0xf]
        %v734 = vld [vmem:[%s289 + $0x54] sm:$0xf]
        %v735 = vld [vmem:[%s289 + $0x58] sm:$0xf]
        %v736 = vld [vmem:[%s289 + $0x5c] sm:$0xf]
        %v737 = vld [vmem:[%s289 + $0x60] sm:$0xf]
        %v738 = vld [vmem:[%s289 + $0x64] sm:$0xf]
        %v739 = vld [vmem:[%s289 + $0x68] sm:$0xf]
        %v740 = vld [vmem:[%s289 + $0x6c] sm:$0xf]
        %v741 = vld [vmem:[%s289 + $0x70] sm:$0xf]
        %v742 = vld [vmem:[%s289 + $0x74] sm:$0xf]
        %v743 = vld [vmem:[%s289 + $0x78] sm:$0xf]
        %v744 = vld [vmem:[%s289 + $0x7c] sm:$0xf]
        %v777 = vunpack.c.l.b16 %v713
        %v778 = vunpack.c.l.b16 %v714
        %v779 = vunpack.c.l.b16 %v715
        %v780 = vunpack.c.l.b16 %v716
        %v781 = vunpack.c.l.b16 %v717
        %v782 = vunpack.c.l.b16 %v718
        %v783 = vunpack.c.l.b16 %v719
        %v784 = vunpack.c.l.b16 %v720
        %v785 = vunpack.c.l.b16 %v721
        %v786 = vunpack.c.l.b16 %v722
        %v787 = vunpack.c.l.b16 %v723
        %v788 = vunpack.c.l.b16 %v724
        %v789 = vunpack.c.l.b16 %v725
        %v790 = vunpack.c.l.b16 %v726
        %v791 = vunpack.c.l.b16 %v727
        %v792 = vunpack.c.l.b16 %v728
        %v793 = vunpack.c.l.b16 %v729
        %v794 = vunpack.c.l.b16 %v730
        %v795 = vunpack.c.l.b16 %v731
        %v796 = vunpack.c.l.b16 %v732
        %v797 = vunpack.c.l.b16 %v733
        %v798 = vunpack.c.l.b16 %v734
        %v799 = vunpack.c.l.b16 %v735
        %v800 = vunpack.c.l.b16 %v736
        %v801 = vunpack.c.l.b16 %v737
        %v802 = vunpack.c.l.b16 %v738
        %v803 = vunpack.c.l.b16 %v739
        %v804 = vunpack.c.l.b16 %v740
        %v805 = vunpack.c.l.b16 %v741
        %v806 = vunpack.c.l.b16 %v742
        %v807 = vunpack.c.l.b16 %v743
        %v808 = vunpack.c.l.b16 %v744
        %v809 = vpack.c.b16 %v778, %v777
        %v810 = vpack.c.b16 %v780, %v779
        %v811 = vpack.c.b16 %v782, %v781
        %v812 = vpack.c.b16 %v784, %v783
        %v813 = vpack.c.b16 %v786, %v785
        %v814 = vpack.c.b16 %v788, %v787
        %v815 = vpack.c.b16 %v790, %v789
        %v816 = vpack.c.b16 %v792, %v791
        %v817 = vpack.c.b16 %v794, %v793
        %v818 = vpack.c.b16 %v796, %v795
        %v819 = vpack.c.b16 %v798, %v797
        %v820 = vpack.c.b16 %v800, %v799
        %v821 = vpack.c.b16 %v802, %v801
        %v822 = vpack.c.b16 %v804, %v803
        %v823 = vpack.c.b16 %v806, %v805
        %v824 = vpack.c.b16 %v808, %v807
        %841 = vmatprep.subr.bf16.mxu0 0
        %842 = vmatpush1.bf16.msra.mxu0 %v809
        %843 = vmatprep.subr.bf16.mxu0 0
        %844 = vmatpush1.bf16.msra.mxu0 %v810
        %845 = vmatprep.subr.bf16.mxu0 0
        %846 = vmatpush1.bf16.msra.mxu0 %v811
        %847 = vmatprep.subr.bf16.mxu0 0
        %848 = vmatpush1.bf16.msra.mxu0 %v812
        %849 = vmatprep.subr.bf16.mxu0 0
        %850 = vmatpush1.bf16.msra.mxu0 %v813
        %851 = vmatprep.subr.bf16.mxu0 0
        %852 = vmatpush1.bf16.msra.mxu0 %v814
        %853 = vmatprep.subr.bf16.mxu0 0
        %854 = vmatpush1.bf16.msra.mxu0 %v815
        %855 = vmatprep.subr.bf16.mxu0 0
        %856 = vmatpush1.bf16.msra.mxu0 %v816
        %857 = vmatprep.subr.bf16.mxu0 0
        %858 = vmatpush1.bf16.msra.mxu0 %v817
        %859 = vmatprep.subr.bf16.mxu0 0
        %860 = vmatpush1.bf16.msra.mxu0 %v818
        %861 = vmatprep.subr.bf16.mxu0 0
        %862 = vmatpush1.bf16.msra.mxu0 %v819
        %863 = vmatprep.subr.bf16.mxu0 0
        %864 = vmatpush1.bf16.msra.mxu0 %v820
        %865 = vmatprep.subr.bf16.mxu0 0
        %866 = vmatpush1.bf16.msra.mxu0 %v821
        %867 = vmatprep.subr.bf16.mxu0 0
        %868 = vmatpush1.bf16.msra.mxu0 %v822
        %869 = vmatprep.subr.bf16.mxu0 0
        %870 = vmatpush1.bf16.msra.mxu0 %v823
        %871 = vmatprep.subr.bf16.mxu0 0
        %872 = vmatpush1.bf16.msra.mxu0 %v824
        %873 = vmatprep.mubr.bf16.mxu0 %v712
        %874 = vmatmul.mubr.bf16.gmra.mrb[0].mxu0 %v711
        %v875 = vpop.f32.mrb[0].mxu0
        %v876 = vadd.f32 0.0, %v875
        %v877 = vpop.f32.mrb[0].mxu0
        %v878 = vpop.f32.mrb[0].mxu0
        %v879 = vadd.f32 0.0, %v878
        %v880 = vpop.f32.mrb[0].mxu0
        %881 = vdwg.mxu0
        %v882 = vadd.f32 %v709, %v876
        %v883 = vadd.f32 %v710, %v879
        %884 = vst [vmem:[#allocation2] sm:$0xff] %v882
        %885 = vst [vmem:[#allocation2 + $0x8] sm:$0xff] %v883
        %p886 = scmp.eq.s32.totalorder %s24, 1
        // Predicated region
        $region61: #{tpu_custom_call.1} parent=39 // pred_check
          %p887 = pneg %p886
        $region62: #{tpu_custom_call.1} parent=39 // pred_check_branch
          %889 = sbr.rel (%p887) target = $region64
        $region63: #{tpu_custom_call.1} parent=39 // pred_region
          %v890 = vld [vmem:[#allocation2] sm:$0xff]
          %v891 = vld [vmem:[#allocation2 + $0x8] sm:$0xff]
          %v892 = vmul.f32 %v890, %v890
          %v893 = vmul.f32 %v891, %v891
          %894 = vadd.xlane.f32.xlu0 %v892
          %v895 = vpop.xlane.xlu0 %894
          %896 = vadd.xlane.f32.xlu0 %v893
          %v897 = vpop.xlane.xlu0 %896
          %v898 = vmax.f32 %v895, 1e-24
          %v899 = vmax.f32 %v897, 1e-24
          %v900 = vrsqrt.pop %v898
          %v901 = vrsqrt.pop %v899
          %v902 = vmul.f32 %v890, %v900
          %v903 = vmul.f32 %v891, %v901
          %904 = vst [vmem:[#allocation11] sm:$0xff] %v902
          %905 = vst [vmem:[#allocation11 + $0x8] sm:$0xff] %v903
        $region64: #{tpu_custom_call.1} parent=39 // pred_fallthru
          _
        // Predicated region
        $region65: #{tpu_custom_call.1} parent=39 // pred_check
          %p906 = pneg %p157
        $region66: #{tpu_custom_call.1} parent=39 // pred_check_branch
          %908 = sbr.rel (%p906) target = $region68
        $region67: #{tpu_custom_call.1} parent=39 // pred_region
          %s910 = ssub.s32 256, 256
          %911 = vsyncadd [#allocation5], %s910
          %s912 = sshll.u32 [#allocation11], 4
          %s913 = int_to_ptr.vmem [resolvable:$true] %s912
          %918 = dma.vmem_to_hbm [thread:$0]  %s913, 256, %s5, [#allocation5], 128, 128, 8
        $region68: #{tpu_custom_call.1} parent=39 // pred_fallthru
          _
        // Predicated region
        $region69: #{tpu_custom_call.1} parent=39 // pred_check
          %p919 = pneg %p157
        $region70: #{tpu_custom_call.1} parent=39 // pred_check_branch
          %921 = sbr.rel (%p919) target = $region72
        $region71: #{tpu_custom_call.1} parent=39 // pred_region
          %922 = dma.done [#allocation5], 256
        $region72: #{tpu_custom_call.1} parent=39 // pred_fallthru
          _
      $region40: #{tpu_custom_call.1} parent=5 // pred_fallthru
        _
      %p923 = scmp.le.s32.totalorder 2, %s19
      // Predicated region
      $region73: #{tpu_custom_call.1} parent=5 // pred_check
        %p924 = pneg %p923
      $region74: #{tpu_custom_call.1} parent=5 // pred_check_branch
        %926 = sbr.rel (%p924) target = $region76
      $region75: #{tpu_custom_call.1} parent=5 // pred_region
        %s927 = ssub.s32 %s19, 2
      $region76: #{tpu_custom_call.1} parent=5 // pred_fallthru
        _
    $region6: #{tpu_custom_call.1} parent=1 // loop_footer
      %s23 = sadd.s32 1, %s19
    $region7: #{tpu_custom_call.1} parent=1 // loop_footer_branch
      %18 = sbr.rel target = $region3
    $region8: #{tpu_custom_call.1} parent=1 // loop_exit
      _
    %928 = vsyncpa [#allocation4], 1
    %s929 = scalar_lea.sflag [#allocation4], 1
    %930 = vsyncpa %s929, 1
    %931 = vsyncpa [#allocation7], 1
    %s932 = scalar_lea.sflag [#allocation7], 1
    %933 = vsyncpa %s932, 1
    %934 = vsyncpa [#allocation10], 1
    %s935 = scalar_lea.sflag [#allocation10], 1
    %936 = vsyncpa %s935, 1
    %937 = vsyncpa [#allocation5], 1
    %s938 = scalar_lea.sflag [#allocation5], 1
    %939 = vsyncpa %s938, 1

// kernel: tpu_custom_call.1
$region0: #{tpu_custom_call.1}
  #allocation0 [shape = 'u32[]', space=smem, size = 0x4, offset = 0x4, fixed_abs, tag = 'smem constant byte address 0x4 - core index']
  #allocation1 [shape = 'u32[144,128]{1,0:T(1,128)}', space=vmem, size = 0x12000, scoped, tag = 'internal scratch']
  #allocation2 [shape = 'f32[16,128]{1,0:T(8,128)}', space=vmem, size = 0x2000, scoped, tag = 'scratch operand']
  %s0 = inlined_call_operand.hbm [shape: bf16[16,256], index: 0, kind: input, shape index: {}]
  %s1 = inlined_call_operand.hbm [shape: bf16[256,512], index: 1, kind: input, shape index: {}]
  %s2 = inlined_call_operand.hbm [shape: f32[2,512], index: 2, kind: input, shape index: {}]
  %s3 = inlined_call_operand.hbm [shape: bf16[512,128], index: 3, kind: input, shape index: {}]
  %s4 = inlined_call_operand.vmem [shape: f32[1,128], index: 4, kind: input, shape index: {}]
  %s5 = inlined_call_operand.hbm [shape: f32[16,128], index: 5, kind: output, shape index: {}]
  %s6 = sld [smem:[#allocation0]]
  $region77: #{tpu_custom_call.1} parent=0
    _
  %s8 = ssub.s32 1, %s6
  %s9 = scalar_select 0, %s8, %s6
  $region1: #{tpu_custom_call.1} parent=0
    #allocation3 [shape = 'u8[8192]{0}', space=vmem, size = 0x2000, scoped, tag = 'input window, operand 0, single buffered']
    #allocation4 [shape = 's32[2]{0}', space=sflag, size = 0x8, scoped, tag = 'scoped memory for tpu_custom_call.1']
    #allocation5 [shape = 's32[2]{0}', space=sflag, size = 0x8, scoped, tag = 'scoped memory for tpu_custom_call.1']
    #allocation6 [shape = 'u8[262144]{0}', space=vmem, size = 0x40000, scoped, tag = 'input window, operand 1']
    #allocation7 [shape = 's32[2]{0}', space=sflag, size = 0x8, scoped, tag = 'scoped memory for tpu_custom_call.1']
    #allocation8 [shape = 'u8[4096]{0}', space=vmem, size = 0x1000, scoped, tag = 'input window, operand 2']
    #allocation9 [shape = 'u8[131072]{0}', space=vmem, size = 0x20000, scoped, tag = 'input window, operand 3']
    #allocation10 [shape = 's32[2]{0}', space=sflag, size = 0x8, scoped, tag = 'scoped memory for tpu_custom_call.1']
    #allocation11 [shape = 'u8[8192]{0}', space=vmem, size = 0x2000, scoped, tag = 'output window, operand 0, single buffered']
    %10 = vsyncpa [#allocation4], 0
    %11 = vsyncpa [#allocation7], 0
    %s12 = scalar_lea.sflag [#allocation7], 1
    %13 = vsyncpa %s12, 0
    %14 = vsyncpa [#allocation10], 0
    %s15 = scalar_lea.sflag [#allocation10], 1
    %16 = vsyncpa %s15, 0
    %17 = vsyncpa [#allocation5], 0
    loop: start=0, step=1, limit=4
    $region2: #{tpu_custom_call.1} parent=1 // loop_pre_header
      _
    $region3: #{tpu_custom_call.1} parent=1 // loop_header
      %s19 = sphi 0, %s23
      %p20 = scmp.ge.s32.totalorder %s19, 4
      %s27 = sphi 0, %s27
      %s29 = sphi 0, %s27
      %s30 = sphi 0, %s29
      %s44 = sphi 0, %s30
      %s50 = sphi 0, %s52
      %s53 = sphi 0, %s50
      %s54 = sphi 0, %s53
      %s70 = sphi 0, %s54
      %s76 = sphi 0, %s78
      %s79 = sphi 0, %s76
      %s80 = sphi 0, %s79
      %s96 = sphi 0, %s80
      %s102 = sphi 0, %s104
      %s105 = sphi 0, %s102
      %s106 = sphi 0, %s105
      %s122 = sphi 0, %s106
      %s126 = sphi 0, %s126
      %s128 = sphi 0, %s126
      %s129 = sphi 0, %s128
      %s143 = sphi 0, %s129
      %s147 = sphi 0, %s147
      %s149 = sphi 0, %s147
      %s150 = sphi 0, %s149
      %s164 = sphi 0, %s150
    $region4: #{tpu_custom_call.1} parent=1 // loop_header_branch
      %22 = sbr.rel (%p20) target = $region8
    $region5: #{tpu_custom_call.1} parent=1 // loop_body
      %s24 = ssub.s32 %s19, 1
      %s25 = ssub.s32 %s19, 2
      %s26 = sadd.s32 %s19, 1
      %s28 = sadd.s32 %s27, 1
      %p31 = scmp.eq.s32.totalorder %s19, 1
      %p32 = scmp.ne.s32.totalorder %s27, %s29
      %p33 = scmp.eq.s32.totalorder %s19, 0
      %p34 = por %p32, %p33
      %p35 = scmp.ne.s32.totalorder %s27, %s29
      %p36 = scmp.eq.s32.totalorder %s24, 1
      %p37 = por %p35, %p36
      %p38 = scmp.ne.s32.totalorder %s29, %s30
      %p39 = scmp.eq.s32.totalorder %s24, 0
      %p40 = por %p38, %p39
      %p41 = scmp.ne.s32.totalorder %s29, %s30
      %p42 = scmp.eq.s32.totalorder %s25, 1
      %p43 = por %p41, %p42
      %p45 = scmp.ne.s32.totalorder %s30, %s44
      %p46 = scmp.eq.s32.totalorder %s25, 0
      %p47 = por %p45, %p46
      %s48 = ssub.s32 %s19, %s26
      %p49 = scmp.eq.s32.totalorder %s48, 0
      %s51 = sadd.s32 %s50, 1
      %s52 = scalar_select %p49, %s50, %s51
      %p55 = pneg %p49
      %p56 = scmp.eq.s32.totalorder %s19, 1
      %p57 = por %p55, %p56
      %p58 = scmp.ne.s32.totalorder %s50, %s53
      %p59 = scmp.eq.s32.totalorder %s19, 0
      %p60 = por %p58, %p59
      %p61 = scmp.ne.s32.totalorder %s50, %s53
      %p62 = scmp.eq.s32.totalorder %s24, 1
      %p63 = por %p61, %p62
      %p64 = scmp.ne.s32.totalorder %s53, %s54
      %p65 = scmp.eq.s32.totalorder %s24, 0
      %p66 = por %p64, %p65
      %p67 = scmp.ne.s32.totalorder %s53, %s54
      %p68 = scmp.eq.s32.totalorder %s25, 1
      %p69 = por %p67, %p68
      %p71 = scmp.ne.s32.totalorder %s54, %s70
      %p72 = scmp.eq.s32.totalorder %s25, 0
      %p73 = por %p71, %p72
      %s74 = ssub.s32 %s19, %s26
      %p75 = scmp.eq.s32.totalorder %s74, 0
      %s77 = sadd.s32 %s76, 1
      %s78 = scalar_select %p75, %s76, %s77
      %p81 = pneg %p75
      %p82 = scmp.eq.s32.totalorder %s19, 1
      %p83 = por %p81, %p82
      %p84 = scmp.ne.s32.totalorder %s76, %s79
      %p85 = scmp.eq.s32.totalorder %s19, 0
      %p86 = por %p84, %p85
      %p87 = scmp.ne.s32.totalorder %s76, %s79
      %p88 = scmp.eq.s32.totalorder %s24, 1
      %p89 = por %p87, %p88
      %p90 = scmp.ne.s32.totalorder %s79, %s80
      %p91 = scmp.eq.s32.totalorder %s24, 0
      %p92 = por %p90, %p91
      %p93 = scmp.ne.s32.totalorder %s79, %s80
      %p94 = scmp.eq.s32.totalorder %s25, 1
      %p95 = por %p93, %p94
      %p97 = scmp.ne.s32.totalorder %s80, %s96
      %p98 = scmp.eq.s32.totalorder %s25, 0
      %p99 = por %p97, %p98
      %s100 = ssub.s32 %s19, %s26
      %p101 = scmp.eq.s32.totalorder %s100, 0
      %s103 = sadd.s32 %s102, 1
      %s104 = scalar_select %p101, %s102, %s103
      %p107 = pneg %p101
      %p108 = scmp.eq.s32.totalorder %s19, 1
      %p109 = por %p107, %p108
      %p110 = scmp.ne.s32.totalorder %s102, %s105
      %p111 = scmp.eq.s32.totalorder %s19, 0
      %p112 = por %p110, %p111
      %p113 = scmp.ne.s32.totalorder %s102, %s105
      %p114 = scmp.eq.s32.totalorder %s24, 1
      %p115 = por %p113, %p114
      %p116 = scmp.ne.s32.totalorder %s105, %s106
      %p117 = scmp.eq.s32.totalorder %s24, 0
      %p118 = por %p116, %p117
      %p119 = scmp.ne.s32.totalorder %s105, %s106
      %p120 = scmp.eq.s32.totalorder %s25, 1
      %p121 = por %p119, %p120
      %p123 = scmp.ne.s32.totalorder %s106, %s122
      %p124 = scmp.eq.s32.totalorder %s25, 0
      %p125 = por %p123, %p124
      %s127 = sadd.s32 %s126, 1
      %p130 = scmp.eq.s32.totalorder %s19, 1
      %p131 = scmp.ne.s32.totalorder %s126, %s128
      %p132 = scmp.eq.s32.totalorder %s19, 0
      %p133 = por %p131, %p132
      %p134 = scmp.ne.s32.totalorder %s126, %s128
      %p135 = scmp.eq.s32.totalorder %s24, 1
      %p136 = por %p134, %p135
      %p137 = scmp.ne.s32.totalorder %s128, %s129
      %p138 = scmp.eq.s32.totalorder %s24, 0
      %p139 = por %p137, %p138
      %p140 = scmp.ne.s32.totalorder %s128, %s129
      %p141 = scmp.eq.s32.totalorder %s25, 1
      %p142 = por %p140, %p141
      %p144 = scmp.ne.s32.totalorder %s129, %s143
      %p145 = scmp.eq.s32.totalorder %s25, 0
      %p146 = por %p144, %p145
      %s148 = sadd.s32 %s147, 1
      %p151 = scmp.eq.s32.totalorder %s19, 1
      %p152 = scmp.ne.s32.totalorder %s147, %s149
      %p153 = scmp.eq.s32.totalorder %s19, 0
      %p154 = por %p152, %p153
      %p155 = scmp.ne.s32.totalorder %s147, %s149
      %p156 = scmp.eq.s32.totalorder %s24, 1
      %p157 = por %p155, %p156
      %p158 = scmp.ne.s32.totalorder %s149, %s150
      %p159 = scmp.eq.s32.totalorder %s24, 0
      %p160 = por %p158, %p159
      %p161 = scmp.ne.s32.totalorder %s149, %s150
      %p162 = scmp.eq.s32.totalorder %s25, 1
      %p163 = por %p161, %p162
      %p165 = scmp.ne.s32.totalorder %s150, %s164
      %p166 = scmp.eq.s32.totalorder %s25, 0
      %p167 = por %p165, %p166
      %p168 = scmp.le.s32.totalorder 1, %s19
      %p169 = scmp.lt.s32.totalorder %s19, 3
      %p170 = pnand %p168, %p169
      %p171 = pneg %p170
      // Predicated region
      $region9: #{tpu_custom_call.1} parent=5 // pred_check
        _
      $region10: #{tpu_custom_call.1} parent=5 // pred_check_branch
        %173 = sbr.rel (%p170) target = $region12
      $region11: #{tpu_custom_call.1} parent=5 // pred_region
        %s174 = ssub.s32 %s19, 1
        // Predicated region
        $region13: #{tpu_custom_call.1} parent=11 // pred_check
          %p175 = pneg %p40
        $region14: #{tpu_custom_call.1} parent=11 // pred_check_branch
          %177 = sbr.rel (%p175) target = $region16
        $region15: #{tpu_custom_call.1} parent=11 // pred_region
          %s179 = ssub.s32 256, 256
          %180 = vsyncadd [#allocation4], %s179
          %s181 = sshll.u32 [#allocation3], 4
          %s182 = int_to_ptr.vmem [resolvable:$true] %s181
          %187 = dma.hbm_to_vmem [thread:$0]  %s0, 256, %s182, [#allocation4], 128, 128, 8
        $region16: #{tpu_custom_call.1} parent=11 // pred_fallthru
          _
        // Predicated region
        $region17: #{tpu_custom_call.1} parent=11 // pred_check
          %p188 = pneg %p139
        $region18: #{tpu_custom_call.1} parent=11 // pred_check_branch
          %190 = sbr.rel (%p188) target = $region20
        $region19: #{tpu_custom_call.1} parent=11 // pred_region
          _
        $region20: #{tpu_custom_call.1} parent=11 // pred_fallthru
          _
      $region12: #{tpu_custom_call.1} parent=5 // pred_fallthru
        _
      %p191 = scmp.lt.s32.totalorder %s19, 2
      // Predicated region
      $region21: #{tpu_custom_call.1} parent=5 // pred_check
        %p192 = pneg %p191
      $region22: #{tpu_custom_call.1} parent=5 // pred_check_branch
        %194 = sbr.rel (%p192) target = $region24
      $region23: #{tpu_custom_call.1} parent=5 // pred_region
        // Predicated region
        $region25: #{tpu_custom_call.1} parent=23 // pred_check
          %p195 = pneg %p60
        $region26: #{tpu_custom_call.1} parent=23 // pred_check_branch
          %197 = sbr.rel (%p195) target = $region28
        $region27: #{tpu_custom_call.1} parent=23 // pred_region
          %s198 = sand.u32 %s19, 1
          %s199 = scalar_lea.sflag [#allocation7], %s198
          %s200 = sand.u32 %s50, 1
          %s201 = smul.addr %s200, 256
          %s202 = scalar_lea.vmem [#allocation6], %s201
          %s203 = smul.u32 2, %s19
          %s205 = ssub.s32 4096, 4096
          %206 = vsyncadd %s199, %s205
          %s207 = smul.addr %s203, 64
          %s208 = scalar_lea.hbm %s1, %s207
          %s209 = sshll.u32 %s202, 4
          %s210 = int_to_ptr.vmem [resolvable:$true] %s209
          %215 = dma.hbm_to_vmem [thread:$0]  %s208, 4096, %s210, %s199, 256, 128, 8
        $region28: #{tpu_custom_call.1} parent=23 // pred_fallthru
          _
        // Predicated region
        $region29: #{tpu_custom_call.1} parent=23 // pred_check
          %p216 = pneg %p86
        $region30: #{tpu_custom_call.1} parent=23 // pred_check_branch
          %218 = sbr.rel (%p216) target = $region32
        $region31: #{tpu_custom_call.1} parent=23 // pred_region
          %s219 = sand.u32 %s19, 1
          %s220 = scalar_lea.sflag [#allocation7], %s219
          %s221 = sand.u32 %s76, 1
          %s222 = smul.addr %s221, 4
          %s223 = scalar_lea.vmem [#allocation8], %s222
          %s224 = smul.u32 2, %s19
          %s226 = ssub.s32 64, 64
          %227 = vsyncadd %s220, %s226
          %s228 = smul.addr %s224, 32
          %s229 = scalar_lea.hbm %s2, %s228
          %s231 = sshll.u32 %s223, 4
          %s232 = int_to_ptr.vmem [resolvable:$true] %s231
          %234 = dma.hbm_to_vmem [thread:$0]  %s229, 64, %s232, %s220
        $region32: #{tpu_custom_call.1} parent=23 // pred_fallthru
          _
        // Predicated region
        $region33: #{tpu_custom_call.1} parent=23 // pred_check
          %p235 = pneg %p112
        $region34: #{tpu_custom_call.1} parent=23 // pred_check_branch
          %237 = sbr.rel (%p235) target = $region36
        $region35: #{tpu_custom_call.1} parent=23 // pred_region
          %s238 = sand.u32 %s102, 1
          %s239 = scalar_lea.sflag [#allocation10], %s238
          %s240 = sand.u32 %s102, 1
          %s241 = smul.addr %s240, 128
          %s242 = scalar_lea.vmem [#allocation9], %s241
          %s243 = smul.u32 32, %s19
          %s245 = ssub.s32 2048, 2048
          %246 = vsyncadd %s239, %s245
          %s247 = smul.addr %s243, 64
          %s248 = scalar_lea.hbm %s3, %s247
          %s249 = sshll.u32 %s242, 4
          %s250 = int_to_ptr.vmem [resolvable:$true] %s249
          %255 = dma.hbm_to_vmem [thread:$0]  %s248, 2048, %s250, %s239, 64, 64, 4
        $region36: #{tpu_custom_call.1} parent=23 // pred_fallthru
          _
      $region24: #{tpu_custom_call.1} parent=5 // pred_fallthru
        _
      %p256 = scmp.le.s32.totalorder 1, %s19
      %p257 = scmp.lt.s32.totalorder %s19, 3
      %p258 = pnand %p256, %p257
      %p259 = pneg %p258
      // Predicated region
      $region37: #{tpu_custom_call.1} parent=5 // pred_check
        _
      $region38: #{tpu_custom_call.1} parent=5 // pred_check_branch
        %261 = sbr.rel (%p258) target = $region40
      $region39: #{tpu_custom_call.1} parent=5 // pred_region
        %s262 = ssub.s32 %s19, 1
        // Predicated region
        $region41: #{tpu_custom_call.1} parent=39 // pred_check
          %p263 = pneg %p40
        $region42: #{tpu_custom_call.1} parent=39 // pred_check_branch
          %265 = sbr.rel (%p263) target = $region44
        $region43: #{tpu_custom_call.1} parent=39 // pred_region
          %266 = dma.done [#allocation4], 256
        $region44: #{tpu_custom_call.1} parent=39 // pred_fallthru
          _
        %s267 = sand.u32 %s24, 1
        %s268 = scalar_lea.sflag [#allocation7], %s267
        %s269 = sand.u32 %s53, 1
        %s270 = smul.addr %s269, 256
        %s271 = scalar_lea.vmem [#allocation6], %s270
        // Predicated region
        $region45: #{tpu_custom_call.1} parent=39 // pred_check
          %p272 = pneg %p66
        $region46: #{tpu_custom_call.1} parent=39 // pred_check_branch
          %274 = sbr.rel (%p272) target = $region48
        $region47: #{tpu_custom_call.1} parent=39 // pred_region
          %275 = dma.done %s268, 4096
        $region48: #{tpu_custom_call.1} parent=39 // pred_fallthru
          _
        %s276 = sand.u32 %s24, 1
        %s277 = scalar_lea.sflag [#allocation7], %s276
        %s278 = sand.u32 %s79, 1
        %s279 = smul.addr %s278, 4
        %s280 = scalar_lea.vmem [#allocation8], %s279
        // Predicated region
        $region49: #{tpu_custom_call.1} parent=39 // pred_check
          %p281 = pneg %p92
        $region50: #{tpu_custom_call.1} parent=39 // pred_check_branch
          %283 = sbr.rel (%p281) target = $region52
        $region51: #{tpu_custom_call.1} parent=39 // pred_region
          %284 = dma.done %s277, 64
        $region52: #{tpu_custom_call.1} parent=39 // pred_fallthru
          _
        %s285 = sand.u32 %s105, 1
        %s286 = scalar_lea.sflag [#allocation10], %s285
        %s287 = sand.u32 %s105, 1
        %s288 = smul.addr %s287, 128
        %s289 = scalar_lea.vmem [#allocation9], %s288
        // Predicated region
        $region53: #{tpu_custom_call.1} parent=39 // pred_check
          %p290 = pneg %p118
        $region54: #{tpu_custom_call.1} parent=39 // pred_check_branch
          %292 = sbr.rel (%p290) target = $region56
        $region55: #{tpu_custom_call.1} parent=39 // pred_region
          %293 = dma.done %s286, 2048
        $region56: #{tpu_custom_call.1} parent=39 // pred_fallthru
          _
        %p294 = pneg %p40
        %p295 = pneg %p37
        %s296 = sand.u32 %s24, 1
        %s297 = scalar_lea.sflag [#allocation7], %s296
        %s298 = sand.u32 %s53, 1
        %s299 = smul.addr %s298, 256
        %s300 = scalar_lea.vmem [#allocation6], %s299
        %p301 = pneg %p66
        %p302 = pneg %p63
        %s303 = sand.u32 %s24, 1
        %s304 = scalar_lea.sflag [#allocation7], %s303
        %s305 = sand.u32 %s79, 1
        %s306 = smul.addr %s305, 4
        %s307 = scalar_lea.vmem [#allocation8], %s306
        %p308 = pneg %p92
        %p309 = pneg %p89
        %s310 = sand.u32 %s105, 1
        %s311 = scalar_lea.sflag [#allocation10], %s310
        %s312 = sand.u32 %s105, 1
        %s313 = smul.addr %s312, 128
        %s314 = scalar_lea.vmem [#allocation9], %s313
        %p315 = pneg %p118
        %p316 = pneg %p115
        %p317 = pneg %p139
        %p318 = pneg %p136
        %p319 = pneg %p160
        %p320 = pneg %p157
        %s321 = smul.u32 2, %s24
        %s322 = smul.u32 2, %s24
        %s323 = smul.u32 32, %s24
        %p325 = scmp.eq.s32.totalorder %s24, 0
        // Predicated region
        $region57: #{tpu_custom_call.1} parent=39 // pred_check
          %p326 = pneg %p325
        $region58: #{tpu_custom_call.1} parent=39 // pred_check_branch
          %328 = sbr.rel (%p326) target = $region60
        $region59: #{tpu_custom_call.1} parent=39 // pred_region
          %v329 = vld [vmem:[%s4] sm:$0x1]
          %v331 = vlaneseq
          %v332 = vshrl.u32 %v331, 7
          %v333 = vsub.s32 0, %v332
          %v334 = vrot.slane %v329, %v333
          %336 = vst [vmem:[#allocation2] sm:$0xff] %v334
          %337 = vst [vmem:[#allocation2 + $0x8] sm:$0xff] %v334
        $region60: #{tpu_custom_call.1} parent=39 // pred_fallthru
          _
        %v338 = vld [vmem:[#allocation3] sm:$0xff]
        %v339 = vld [vmem:[#allocation3 + $0x8] sm:$0xff]
        %v340 = vld [vmem:[%s271] sm:$0xff]
        %v341 = vld [vmem:[%s271 + $0x8] sm:$0xff]
        %v342 = vld [vmem:[%s271 + $0x10] sm:$0xff]
        %v343 = vld [vmem:[%s271 + $0x18] sm:$0xff]
        %v344 = vld [vmem:[%s271 + $0x20] sm:$0xff]
        %v345 = vld [vmem:[%s271 + $0x28] sm:$0xff]
        %v346 = vld [vmem:[%s271 + $0x30] sm:$0xff]
        %v347 = vld [vmem:[%s271 + $0x38] sm:$0xff]
        %v348 = vld [vmem:[%s271 + $0x40] sm:$0xff]
        %v349 = vld [vmem:[%s271 + $0x48] sm:$0xff]
        %v350 = vld [vmem:[%s271 + $0x50] sm:$0xff]
        %v351 = vld [vmem:[%s271 + $0x58] sm:$0xff]
        %v352 = vld [vmem:[%s271 + $0x60] sm:$0xff]
        %v353 = vld [vmem:[%s271 + $0x68] sm:$0xff]
        %v354 = vld [vmem:[%s271 + $0x70] sm:$0xff]
        %v355 = vld [vmem:[%s271 + $0x78] sm:$0xff]
        %v356 = vld [vmem:[%s271 + $0x80] sm:$0xff]
        %v357 = vld [vmem:[%s271 + $0x88] sm:$0xff]
        %v358 = vld [vmem:[%s271 + $0x90] sm:$0xff]
        %v359 = vld [vmem:[%s271 + $0x98] sm:$0xff]
        %v360 = vld [vmem:[%s271 + $0xa0] sm:$0xff]
        %v361 = vld [vmem:[%s271 + $0xa8] sm:$0xff]
        %v362 = vld [vmem:[%s271 + $0xb0] sm:$0xff]
        %v363 = vld [vmem:[%s271 + $0xb8] sm:$0xff]
        %v364 = vld [vmem:[%s271 + $0xc0] sm:$0xff]
        %v365 = vld [vmem:[%s271 + $0xc8] sm:$0xff]
        %v366 = vld [vmem:[%s271 + $0xd0] sm:$0xff]
        %v367 = vld [vmem:[%s271 + $0xd8] sm:$0xff]
        %v368 = vld [vmem:[%s271 + $0xe0] sm:$0xff]
        %v369 = vld [vmem:[%s271 + $0xe8] sm:$0xff]
        %v370 = vld [vmem:[%s271 + $0xf0] sm:$0xff]
        %v371 = vld [vmem:[%s271 + $0xf8] sm:$0xff]
        %v374 = vunpack.c.l.b16 %v338
        %v375 = vunpack.c.h.b16 %v338
        %v376 = vunpack.c.l.b16 %v339
        %v377 = vunpack.c.h.b16 %v339
        %v378 = vpack.c.b16 %v376, %v374
        %v379 = vpack.c.b16 %v377, %v375
        %v414 = vunpack.c.l.b16 %v340
        %v415 = vunpack.c.h.b16 %v340
        %v416 = vunpack.c.l.b16 %v341
        %v417 = vunpack.c.h.b16 %v341
        %v418 = vunpack.c.l.b16 %v342
        %v419 = vunpack.c.h.b16 %v342
        %v420 = vunpack.c.l.b16 %v343
        %v421 = vunpack.c.h.b16 %v343
        %v422 = vunpack.c.l.b16 %v344
        %v423 = vunpack.c.h.b16 %v344
        %v424 = vunpack.c.l.b16 %v345
        %v425 = vunpack.c.h.b16 %v345
        %v426 = vunpack.c.l.b16 %v346
        %v427 = vunpack.c.h.b16 %v346
        %v428 = vunpack.c.l.b16 %v347
        %v429 = vunpack.c.h.b16 %v347
        %v430 = vunpack.c.l.b16 %v348
        %v431 = vunpack.c.h.b16 %v348
        %v432 = vunpack.c.l.b16 %v349
        %v433 = vunpack.c.h.b16 %v349
        %v434 = vunpack.c.l.b16 %v350
        %v435 = vunpack.c.h.b16 %v350
        %v436 = vunpack.c.l.b16 %v351
        %v437 = vunpack.c.h.b16 %v351
        %v438 = vunpack.c.l.b16 %v352
        %v439 = vunpack.c.h.b16 %v352
        %v440 = vunpack.c.l.b16 %v353
        %v441 = vunpack.c.h.b16 %v353
        %v442 = vunpack.c.l.b16 %v354
        %v443 = vunpack.c.h.b16 %v354
        %v444 = vunpack.c.l.b16 %v355
        %v445 = vunpack.c.h.b16 %v355
        %v446 = vunpack.c.l.b16 %v356
        %v447 = vunpack.c.h.b16 %v356
        %v448 = vunpack.c.l.b16 %v357
        %v449 = vunpack.c.h.b16 %v357
        %v450 = vunpack.c.l.b16 %v358
        %v451 = vunpack.c.h.b16 %v358
        %v452 = vunpack.c.l.b16 %v359
        %v453 = vunpack.c.h.b16 %v359
        %v454 = vunpack.c.l.b16 %v360
        %v455 = vunpack.c.h.b16 %v360
        %v456 = vunpack.c.l.b16 %v361
        %v457 = vunpack.c.h.b16 %v361
        %v458 = vunpack.c.l.b16 %v362
        %v459 = vunpack.c.h.b16 %v362
        %v460 = vunpack.c.l.b16 %v363
        %v461 = vunpack.c.h.b16 %v363
        %v462 = vunpack.c.l.b16 %v364
        %v463 = vunpack.c.h.b16 %v364
        %v464 = vunpack.c.l.b16 %v365
        %v465 = vunpack.c.h.b16 %v365
        %v466 = vunpack.c.l.b16 %v366
        %v467 = vunpack.c.h.b16 %v366
        %v468 = vunpack.c.l.b16 %v367
        %v469 = vunpack.c.h.b16 %v367
        %v470 = vunpack.c.l.b16 %v368
        %v471 = vunpack.c.h.b16 %v368
        %v472 = vunpack.c.l.b16 %v369
        %v473 = vunpack.c.h.b16 %v369
        %v474 = vunpack.c.l.b16 %v370
        %v475 = vunpack.c.h.b16 %v370
        %v476 = vunpack.c.l.b16 %v371
        %v477 = vunpack.c.h.b16 %v371
        %v478 = vpack.c.b16 %v416, %v414
        %v479 = vpack.c.b16 %v417, %v415
        %v480 = vpack.c.b16 %v420, %v418
        %v481 = vpack.c.b16 %v421, %v419
        %v482 = vpack.c.b16 %v424, %v422
        %v483 = vpack.c.b16 %v425, %v423
        %v484 = vpack.c.b16 %v428, %v426
        %v485 = vpack.c.b16 %v429, %v427
        %v486 = vpack.c.b16 %v432, %v430
        %v487 = vpack.c.b16 %v433, %v431
        %v488 = vpack.c.b16 %v436, %v434
        %v489 = vpack.c.b16 %v437, %v435
        %v490 = vpack.c.b16 %v440, %v438
        %v491 = vpack.c.b16 %v441, %v439
        %v492 = vpack.c.b16 %v444, %v442
        %v493 = vpack.c.b16 %v445, %v443
        %v494 = vpack.c.b16 %v448, %v446
        %v495 = vpack.c.b16 %v449, %v447
        %v496 = vpack.c.b16 %v452, %v450
        %v497 = vpack.c.b16 %v453, %v451
        %v498 = vpack.c.b16 %v456, %v454
        %v499 = vpack.c.b16 %v457, %v455
        %v500 = vpack.c.b16 %v460, %v458
        %v501 = vpack.c.b16 %v461, %v459
        %v502 = vpack.c.b16 %v464, %v462
        %v503 = vpack.c.b16 %v465, %v463
        %v504 = vpack.c.b16 %v468, %v466
        %v505 = vpack.c.b16 %v469, %v467
        %v506 = vpack.c.b16 %v472, %v470
        %v507 = vpack.c.b16 %v473, %v471
        %v508 = vpack.c.b16 %v476, %v474
        %v509 = vpack.c.b16 %v477, %v475
        %542 = vmatprep.subr.bf16.mxu0 %v479
        %543 = vmatpush1.bf16.msra.mxu0 %v478
        %544 = vmatprep.subr.bf16.mxu0 %v481
        %545 = vmatpush1.bf16.msra.mxu0 %v480
        %546 = vmatprep.subr.bf16.mxu0 %v483
        %547 = vmatpush1.bf16.msra.mxu0 %v482
        %548 = vmatprep.subr.bf16.mxu0 %v485
        %549 = vmatpush1.bf16.msra.mxu0 %v484
        %550 = vmatprep.subr.bf16.mxu0 %v487
        %551 = vmatpush1.bf16.msra.mxu0 %v486
        %552 = vmatprep.subr.bf16.mxu0 %v489
        %553 = vmatpush1.bf16.msra.mxu0 %v488
        %554 = vmatprep.subr.bf16.mxu0 %v491
        %555 = vmatpush1.bf16.msra.mxu0 %v490
        %556 = vmatprep.subr.bf16.mxu0 %v493
        %557 = vmatpush1.bf16.msra.mxu0 %v492
        %558 = vmatprep.subr.bf16.mxu0 %v495
        %559 = vmatpush1.bf16.msra.mxu0 %v494
        %560 = vmatprep.subr.bf16.mxu0 %v497
        %561 = vmatpush1.bf16.msra.mxu0 %v496
        %562 = vmatprep.subr.bf16.mxu0 %v499
        %563 = vmatpush1.bf16.msra.mxu0 %v498
        %564 = vmatprep.subr.bf16.mxu0 %v501
        %565 = vmatpush1.bf16.msra.mxu0 %v500
        %566 = vmatprep.subr.bf16.mxu0 %v503
        %567 = vmatpush1.bf16.msra.mxu0 %v502
        %568 = vmatprep.subr.bf16.mxu0 %v505
        %569 = vmatpush1.bf16.msra.mxu0 %v504
        %570 = vmatprep.subr.bf16.mxu0 %v507
        %571 = vmatpush1.bf16.msra.mxu0 %v506
        %572 = vmatprep.subr.bf16.mxu0 %v509
        %573 = vmatpush1.bf16.msra.mxu0 %v508
        %574 = vmatprep.mubr.bf16.mxu0 %v379
        %575 = vmatmul.mubr.bf16.gmra.mrb[0].mxu0 %v378
        %v576 = vpop.f32.mrb[0].mxu0
        %v577 = vadd.f32 0.0, %v576
        %v578 = vpop.f32.mrb[0].mxu0
        %v579 = vadd.f32 0.0, %v578
        %v580 = vpop.f32.mrb[0].mxu0
        %v581 = vadd.f32 0.0, %v580
        %v582 = vpop.f32.mrb[0].mxu0
        %v583 = vadd.f32 0.0, %v582
        %584 = vdwg.mxu0
        %v585 = vadd.f32 %v577, %v581
        %v586 = vrot.slane %v585, 4
        %v587 = vadd.f32 %v585, %v586
        %v588 = vrot.slane %v587, 2
        %v589 = vadd.f32 %v587, %v588
        %v590 = vrot.slane %v589, 1
        %v591 = vadd.f32 %v589, %v590
        %v592 = vadd.f32 %v579, %v583
        %v593 = vrot.slane %v592, 4
        %v594 = vadd.f32 %v592, %v593
        %v595 = vrot.slane %v594, 2
        %v596 = vadd.f32 %v594, %v595
        %v597 = vrot.slane %v596, 1
        %v598 = vadd.f32 %v596, %v597
        %v599 = vmul.f32 %v591, 0.125
        %v600 = vmul.f32 %v598, 0.125
        %v601 = vmul.f32 %v577, %v577
        %v602 = vmul.f32 %v579, %v579
        %v603 = vmul.f32 %v581, %v581
        %v604 = vmul.f32 %v583, %v583
        %v605 = vadd.f32 %v601, %v603
        %v606 = vrot.slane %v605, 4
        %v607 = vadd.f32 %v605, %v606
        %v608 = vrot.slane %v607, 2
        %v609 = vadd.f32 %v607, %v608
        %v610 = vrot.slane %v609, 1
        %v611 = vadd.f32 %v609, %v610
        %v612 = vadd.f32 %v602, %v604
        %v613 = vrot.slane %v612, 4
        %v614 = vadd.f32 %v612, %v613
        %v615 = vrot.slane %v614, 2
        %v616 = vadd.f32 %v614, %v615
        %v617 = vrot.slane %v616, 1
        %v618 = vadd.f32 %v616, %v617
        %v619 = vmul.f32 %v611, 0.125
        %v620 = vmul.f32 %v618, 0.125
        %v621 = vmul.f32 %v599, %v599
        %v622 = vmul.f32 %v600, %v600
        %v623 = vsub.f32 %v619, %v621
        %v624 = vsub.f32 %v620, %v622
        %v625 = vmax.f32 %v623, 0.0
        %v626 = vmax.f32 %v624, 0.0
        %v627 = vld [vmem:[%s280] sm:$0xf]
        %v628 = vadd.f32 %v625, 1e-05
        %v629 = vadd.f32 %v626, 1e-05
        %v630 = vrsqrt.pop %v628
        %v631 = vrsqrt.pop %v629
        %v634 = vcombine.low %v630, %v631
        %v636 = vunpack.c.l.s4 1983009808
        %v637 = vunpack.c.0.s8 %v636
        %v638 = vlaneseq
        %v639 = vshrl.u32 %v638, 7
        %v640 = vsub.s32 %v637, %v639
        %v641 = vrot.slane %v634, %v640
        %v643 = vmul.f32 %v627, %v641
        %v645 = vlaneseq
        %v646 = vshrl.u32 %v645, 7
        %v647 = vsub.s32 0, %v646
        %v648 = vrot.slane %v643, %v647
        %v649 = vlaneseq
        %v650 = vshrl.u32 %v649, 7
        %v651 = vsub.s32 2, %v650
        %v652 = vrot.slane %v643, %v651
        %v655 = vmul.f32 %v599, %v648
        %v656 = vmul.f32 %v600, %v652
        %v659 = vcombine.low %v655, %v656
        %v661 = vunpack.c.l.s4 1983009808
        %v662 = vunpack.c.0.s8 %v661
        %v663 = vlaneseq
        %v664 = vshrl.u32 %v663, 7
        %v665 = vsub.s32 %v662, %v664
        %v666 = vrot.slane %v659, %v665
        %v667 = vrot.slane %v666, 7
        %v669 = vsub.f32 %v627, %v667
        %v670 = vlaneseq
        %v671 = vshrl.u32 %v670, 7
        %v672 = vsub.s32 0, %v671
        %v673 = vrot.slane %v648, %v672
        %v674 = vlaneseq
        %v675 = vshrl.u32 %v674, 7
        %v676 = vsub.s32 0, %v675
        %v677 = vrot.slane %v652, %v676
        %v678 = vmul.f32 %v577, %v673
        %v679 = vmul.f32 %v579, %v677
        %v680 = vmul.f32 %v581, %v673
        %v681 = vmul.f32 %v583, %v677
        %v683 = vlaneseq
        %v684 = vshrl.u32 %v683, 7
        %v685 = vsub.s32 1, %v684
        %v686 = vrot.slane %v669, %v685
        %v687 = vlaneseq
        %v688 = vshrl.u32 %v687, 7
        %v689 = vsub.s32 3, %v688
        %v690 = vrot.slane %v669, %v689
        %v693 = vlaneseq
        %v694 = vshrl.u32 %v693, 7
        %v695 = vsub.s32 1, %v694
        %v696 = vrot.slane %v686, %v695
        %v697 = vlaneseq
        %v698 = vshrl.u32 %v697, 7
        %v699 = vsub.s32 1, %v698
        %v700 = vrot.slane %v690, %v699
        %v701 = vadd.f32 %v678, %v696
        %v702 = vadd.f32 %v679, %v700
        %v703 = vadd.f32 %v680, %v696
        %v704 = vadd.f32 %v681, %v700
        %v705 = vmax.f32 %v701, 0.0
        %v706 = vmax.f32 %v702, 0.0
        %v707 = vmax.f32 %v703, 0.0
        %v708 = vmax.f32 %v704, 0.0
        %v709 = vld [vmem:[#allocation2] sm:$0xff]
        %v710 = vld [vmem:[#allocation2 + $0x8] sm:$0xff]
        %v711 = vpack.c.bf16 %v707, %v705
        %v712 = vpack.c.bf16 %v708, %v706
        %v713 = vld [vmem:[%s289] sm:$0xf]
        %v714 = vld [vmem:[%s289 + $0x4] sm:$0xf]
        %v715 = vld [vmem:[%s289 + $0x8] sm:$0xf]
        %v716 = vld [vmem:[%s289 + $0xc] sm:$0xf]
        %v717 = vld [vmem:[%s289 + $0x10] sm:$0xf]
        %v718 = vld [vmem:[%s289 + $0x14] sm:$0xf]
        %v719 = vld [vmem:[%s289 + $0x18] sm:$0xf]
        %v720 = vld [vmem:[%s289 + $0x1c] sm:$0xf]
        %v721 = vld [vmem:[%s289 + $0x20] sm:$0xf]
        %v722 = vld [vmem:[%s289 + $0x24] sm:$0xf]
        %v723 = vld [vmem:[%s289 + $0x28] sm:$0xf]
        %v724 = vld [vmem:[%s289 + $0x2c] sm:$0xf]
        %v725 = vld [vmem:[%s289 + $0x30] sm:$0xf]
        %v726 = vld [vmem:[%s289 + $0x34] sm:$0xf]
        %v727 = vld [vmem:[%s289 + $0x38] sm:$0xf]
        %v728 = vld [vmem:[%s289 + $0x3c] sm:$0xf]
        %v729 = vld [vmem:[%s289 + $0x40] sm:$0xf]
        %v730 = vld [vmem:[%s289 + $0x44] sm:$0xf]
        %v731 = vld [vmem:[%s289 + $0x48] sm:$0xf]
        %v732 = vld [vmem:[%s289 + $0x4c] sm:$0xf]
        %v733 = vld [vmem:[%s289 + $0x50] sm:$0xf]
        %v734 = vld [vmem:[%s289 + $0x54] sm:$0xf]
        %v735 = vld [vmem:[%s289 + $0x58] sm:$0xf]
        %v736 = vld [vmem:[%s289 + $0x5c] sm:$0xf]
        %v737 = vld [vmem:[%s289 + $0x60] sm:$0xf]
        %v738 = vld [vmem:[%s289 + $0x64] sm:$0xf]
        %v739 = vld [vmem:[%s289 + $0x68] sm:$0xf]
        %v740 = vld [vmem:[%s289 + $0x6c] sm:$0xf]
        %v741 = vld [vmem:[%s289 + $0x70] sm:$0xf]
        %v742 = vld [vmem:[%s289 + $0x74] sm:$0xf]
        %v743 = vld [vmem:[%s289 + $0x78] sm:$0xf]
        %v744 = vld [vmem:[%s289 + $0x7c] sm:$0xf]
        %v777 = vunpack.c.l.b16 %v713
        %v778 = vunpack.c.l.b16 %v714
        %v779 = vunpack.c.l.b16 %v715
        %v780 = vunpack.c.l.b16 %v716
        %v781 = vunpack.c.l.b16 %v717
        %v782 = vunpack.c.l.b16 %v718
        %v783 = vunpack.c.l.b16 %v719
        %v784 = vunpack.c.l.b16 %v720
        %v785 = vunpack.c.l.b16 %v721
        %v786 = vunpack.c.l.b16 %v722
        %v787 = vunpack.c.l.b16 %v723
        %v788 = vunpack.c.l.b16 %v724
        %v789 = vunpack.c.l.b16 %v725
        %v790 = vunpack.c.l.b16 %v726
        %v791 = vunpack.c.l.b16 %v727
        %v792 = vunpack.c.l.b16 %v728
        %v793 = vunpack.c.l.b16 %v729
        %v794 = vunpack.c.l.b16 %v730
        %v795 = vunpack.c.l.b16 %v731
        %v796 = vunpack.c.l.b16 %v732
        %v797 = vunpack.c.l.b16 %v733
        %v798 = vunpack.c.l.b16 %v734
        %v799 = vunpack.c.l.b16 %v735
        %v800 = vunpack.c.l.b16 %v736
        %v801 = vunpack.c.l.b16 %v737
        %v802 = vunpack.c.l.b16 %v738
        %v803 = vunpack.c.l.b16 %v739
        %v804 = vunpack.c.l.b16 %v740
        %v805 = vunpack.c.l.b16 %v741
        %v806 = vunpack.c.l.b16 %v742
        %v807 = vunpack.c.l.b16 %v743
        %v808 = vunpack.c.l.b16 %v744
        %v809 = vpack.c.b16 %v778, %v777
        %v810 = vpack.c.b16 %v780, %v779
        %v811 = vpack.c.b16 %v782, %v781
        %v812 = vpack.c.b16 %v784, %v783
        %v813 = vpack.c.b16 %v786, %v785
        %v814 = vpack.c.b16 %v788, %v787
        %v815 = vpack.c.b16 %v790, %v789
        %v816 = vpack.c.b16 %v792, %v791
        %v817 = vpack.c.b16 %v794, %v793
        %v818 = vpack.c.b16 %v796, %v795
        %v819 = vpack.c.b16 %v798, %v797
        %v820 = vpack.c.b16 %v800, %v799
        %v821 = vpack.c.b16 %v802, %v801
        %v822 = vpack.c.b16 %v804, %v803
        %v823 = vpack.c.b16 %v806, %v805
        %v824 = vpack.c.b16 %v808, %v807
        %841 = vmatprep.subr.bf16.mxu0 0
        %842 = vmatpush1.bf16.msra.mxu0 %v809
        %843 = vmatprep.subr.bf16.mxu0 0
        %844 = vmatpush1.bf16.msra.mxu0 %v810
        %845 = vmatprep.subr.bf16.mxu0 0
        %846 = vmatpush1.bf16.msra.mxu0 %v811
        %847 = vmatprep.subr.bf16.mxu0 0
        %848 = vmatpush1.bf16.msra.mxu0 %v812
        %849 = vmatprep.subr.bf16.mxu0 0
        %850 = vmatpush1.bf16.msra.mxu0 %v813
        %851 = vmatprep.subr.bf16.mxu0 0
        %852 = vmatpush1.bf16.msra.mxu0 %v814
        %853 = vmatprep.subr.bf16.mxu0 0
        %854 = vmatpush1.bf16.msra.mxu0 %v815
        %855 = vmatprep.subr.bf16.mxu0 0
        %856 = vmatpush1.bf16.msra.mxu0 %v816
        %857 = vmatprep.subr.bf16.mxu0 0
        %858 = vmatpush1.bf16.msra.mxu0 %v817
        %859 = vmatprep.subr.bf16.mxu0 0
        %860 = vmatpush1.bf16.msra.mxu0 %v818
        %861 = vmatprep.subr.bf16.mxu0 0
        %862 = vmatpush1.bf16.msra.mxu0 %v819
        %863 = vmatprep.subr.bf16.mxu0 0
        %864 = vmatpush1.bf16.msra.mxu0 %v820
        %865 = vmatprep.subr.bf16.mxu0 0
        %866 = vmatpush1.bf16.msra.mxu0 %v821
        %867 = vmatprep.subr.bf16.mxu0 0
        %868 = vmatpush1.bf16.msra.mxu0 %v822
        %869 = vmatprep.subr.bf16.mxu0 0
        %870 = vmatpush1.bf16.msra.mxu0 %v823
        %871 = vmatprep.subr.bf16.mxu0 0
        %872 = vmatpush1.bf16.msra.mxu0 %v824
        %873 = vmatprep.mubr.bf16.mxu0 %v712
        %874 = vmatmul.mubr.bf16.gmra.mrb[0].mxu0 %v711
        %v875 = vpop.f32.mrb[0].mxu0
        %v876 = vadd.f32 0.0, %v875
        %v877 = vpop.f32.mrb[0].mxu0
        %v878 = vpop.f32.mrb[0].mxu0
        %v879 = vadd.f32 0.0, %v878
        %v880 = vpop.f32.mrb[0].mxu0
        %881 = vdwg.mxu0
        %v882 = vadd.f32 %v709, %v876
        %v883 = vadd.f32 %v710, %v879
        %884 = vst [vmem:[#allocation2] sm:$0xff] %v882
        %885 = vst [vmem:[#allocation2 + $0x8] sm:$0xff] %v883
        %p886 = scmp.eq.s32.totalorder %s24, 1
        // Predicated region
        $region61: #{tpu_custom_call.1} parent=39 // pred_check
          %p887 = pneg %p886
        $region62: #{tpu_custom_call.1} parent=39 // pred_check_branch
          %889 = sbr.rel (%p887) target = $region64
        $region63: #{tpu_custom_call.1} parent=39 // pred_region
          %v890 = vld [vmem:[#allocation2] sm:$0xff]
          %v891 = vld [vmem:[#allocation2 + $0x8] sm:$0xff]
          %v892 = vmul.f32 %v890, %v890
          %v893 = vmul.f32 %v891, %v891
          %894 = vadd.xlane.f32.xlu0 %v892
          %v895 = vpop.xlane.xlu0 %894
          %896 = vadd.xlane.f32.xlu0 %v893
          %v897 = vpop.xlane.xlu0 %896
          %v898 = vmax.f32 %v895, 1e-24
          %v899 = vmax.f32 %v897, 1e-24
          %v900 = vrsqrt.pop %v898
          %v901 = vrsqrt.pop %v899
          %v902 = vmul.f32 %v890, %v900
          %v903 = vmul.f32 %v891, %v901
          %904 = vst [vmem:[#allocation11] sm:$0xff] %v902
          %905 = vst [vmem:[#allocation11 + $0x8] sm:$0xff] %v903
        $region64: #{tpu_custom_call.1} parent=39 // pred_fallthru
          _
        // Predicated region
        $region65: #{tpu_custom_call.1} parent=39 // pred_check
          %p906 = pneg %p157
        $region66: #{tpu_custom_call.1} parent=39 // pred_check_branch
          %908 = sbr.rel (%p906) target = $region68
        $region67: #{tpu_custom_call.1} parent=39 // pred_region
          %s910 = ssub.s32 256, 256
          %911 = vsyncadd [#allocation5], %s910
          %s912 = sshll.u32 [#allocation11], 4
          %s913 = int_to_ptr.vmem [resolvable:$true] %s912
          %918 = dma.vmem_to_hbm [thread:$0]  %s913, 256, %s5, [#allocation5], 128, 128, 8
        $region68: #{tpu_custom_call.1} parent=39 // pred_fallthru
          _
        // Predicated region
        $region69: #{tpu_custom_call.1} parent=39 // pred_check
          %p919 = pneg %p157
        $region70: #{tpu_custom_call.1} parent=39 // pred_check_branch
          %921 = sbr.rel (%p919) target = $region72
        $region71: #{tpu_custom_call.1} parent=39 // pred_region
          %922 = dma.done [#allocation5], 256
        $region72: #{tpu_custom_call.1} parent=39 // pred_fallthru
          _
      $region40: #{tpu_custom_call.1} parent=5 // pred_fallthru
        _
      %p923 = scmp.le.s32.totalorder 2, %s19
      // Predicated region
      $region73: #{tpu_custom_call.1} parent=5 // pred_check
        %p924 = pneg %p923
      $region74: #{tpu_custom_call.1} parent=5 // pred_check_branch
        %926 = sbr.rel (%p924) target = $region76
      $region75: #{tpu_custom_call.1} parent=5 // pred_region
        %s927 = ssub.s32 %s19, 2
      $region76: #{tpu_custom_call.1} parent=5 // pred_fallthru
        _
    $region6: #{tpu_custom_call.1} parent=1 // loop_footer
      %s23 = sadd.s32 1, %s19
    $region7: #{tpu_custom_call.1} parent=1 // loop_footer_branch
      %18 = sbr.rel target = $region3
    $region8: #{tpu_custom_call.1} parent=1 // loop_exit
      _
    %928 = vsyncpa [#allocation4], 1
    %s929 = scalar_lea.sflag [#allocation4], 1
    %930 = vsyncpa %s929, 1
    %931 = vsyncpa [#allocation7], 1
    %s932 = scalar_lea.sflag [#allocation7], 1
    %933 = vsyncpa %s932, 1
    %934 = vsyncpa [#allocation10], 1
    %s935 = scalar_lea.sflag [#allocation10], 1
    %936 = vsyncpa %s935, 1
    %937 = vsyncpa [#allocation5], 1
    %s938 = scalar_lea.sflag [#allocation5], 1
    %939 = vsyncpa %s938, 1

</llo_original>
